<compile_context>
chip_gen: v6e
topology: v6e:2x2x1
jax: 0.10.0
libtpu: 0.0.40
codegen_flags: <defaults>
</compile_context>

<pallas_src>
import functools

import jax
import jax.numpy as jnp
from jax.experimental import pallas as pl
from jax.experimental.pallas import tpu as pltpu


def _round_up(x, m):
    return (x + m - 1) // m * m


def _softplus10(x):
    # torch.nn.Softplus(beta=10.0), threshold=20 (default)
    z = 10.0 * x
    return jnp.where(z > 20.0, x,
                     jnp.log1p(jnp.exp(jnp.minimum(z, 20.0))) / 10.0)


# ----------------------------------------------------------------------------
# Kernel (everything channel-major: [C, T], point axis on lanes)
# ----------------------------------------------------------------------------
def _nerf_kernel(freq_ref, pts_ref, dirs_ref,
                 w1T_ref, b1_ref,
                 w2T_ref, b2_ref,
                 wdT_ref, bd_ref,
                 wc1fT_ref, wc1dT_ref, bc1_ref,
                 wc2T_ref, bc2_ref,
                 out_ref):
    f32 = jnp.float32
    dot = functools.partial(jnp.dot, preferred_element_type=f32)

    freqs = freq_ref[...]                       # [NH, 1]
    pts = pts_ref[...]                          # [3, T]
    dirs = dirs_ref[...]                        # [3, T]

    def harmonic_t(xT):
        # xT: [3, T] -> [6*NH, T]; rows ordered [sin(x0*f), sin(x1*f), sin(x2*f),
        # cos(x0*f), cos(x1*f), cos(x2*f)] to match the torch embedding columns.
        # Each [NH, T] piece is a whole 8-sublane group, so the axis-0 stack is
        # cheap; the sin/cos arguments are exact f32 VPU outer products.
        args = [freqs * xT[d:d + 1, :] for d in range(3)]          # [NH, T] each
        sins = [jnp.sin(a) for a in args]
        coss = [jnp.cos(a) for a in args]
        return jnp.concatenate(sins + coss, axis=0)                # [6NH, T]

    # --- trunk MLP: (harmonic -> Linear) -> Softplus -> Linear -> Softplus ---
    embT = harmonic_t(pts)                                          # [6NH, T]
    h1 = _softplus10(dot(w1T_ref[...], embT) + b1_ref[...])         # [H, T]
    feats = _softplus10(dot(w2T_ref[...], h1) + b2_ref[...])        # [H, T]

    # --- density head (row 0 of the lane-dense output block) -----------------
    raw_d = _softplus10(dot(wdT_ref[...], feats) + bd_ref[...])     # [1, T]
    out_ref[0:1, :] = 1.0 - jnp.exp(-raw_d)

    # --- color head -----------------------------------------------------------
    # torch.nn.functional.normalize(dirs, dim=-1) via one EUP rsqrt
    ssq = jnp.sum(dirs * dirs, axis=0, keepdims=True)               # [1, T]
    dirs_n = dirs * jax.lax.rsqrt(jnp.maximum(ssq, 1e-24))
    dembT = harmonic_t(dirs_n)                                      # [6NH, T]
    c1 = _softplus10(dot(wc1fT_ref[...], feats)
                     + dot(wc1dT_ref[...], dembT)
                     + bc1_ref[...])                                # [H, T]
    out_ref[1:4, :] = jax.nn.sigmoid(dot(wc2T_ref[...], c1) + bc2_ref[...])


# ----------------------------------------------------------------------------
# Wrapper
# ----------------------------------------------------------------------------
def nerf_forward_pallas(pts_flat, dirs_flat, params, *, tile=512):
    """pts_flat, dirs_flat: [N, 3] float32; returns (densities [N,1], colors [N,3])."""
    n = pts_flat.shape[0]
    freqs_col = params["freqs"].T                      # [NH, 1]
    nh = int(freqs_col.shape[0])
    h = int(params["w1"].shape[-1])

    # Channel-major weight restructuring (done once, host-side).
    w1T = params["w1"].T                               # [H, 6NH]
    b1c = params["b1"].T                               # [H, 1]
    w2T = params["w2"].T                               # [H, H]
    b2c = params["b2"].T                               # [H, 1]
    wdT = params["wd"].T                               # [1, H]
    bdc = params["bd"].T                               # [1, 1]
    wc1 = params["wc1"]
    wc1fT = wc1[:h].T                                  # [H, H]    (features part)
    wc1dT = wc1[h:].T                                  # [H, 6NH]  (dir-embed part)
    bc1c = params["bc1"].T                             # [H, 1]
    wc2T = params["wc2"].T                             # [3, H]
    bc2c = params["bc2"].T                             # [3, 1]

    # Channel-major inputs: [3, N] so the tiled blocks are lane-dense.
    pts_t = pts_flat.T
    dirs_t = dirs_flat.T

    # Tile selection: multiple of 128; cap so the grid has >= 2 steps whenever
    # N > 128 (lets "parallel" shard across v7x's two TensorCores).
    tile = _round_up(max(128, int(tile)), 128)
    tile = min(tile, _round_up(max(pl.cdiv(n, 2), 128), 128))
    n_pad = _round_up(n, tile)
    if n_pad != n:
        pad = n_pad - n
        pts_t = jnp.pad(pts_t, ((0, 0), (0, pad)))
        dirs_t = jnp.pad(dirs_t, ((0, 0), (0, pad)))
    grid = (n_pad // tile,)

    full = lambda a: pl.BlockSpec(a.shape, lambda i: (0, 0))
    tiled_in = pl.BlockSpec((3, tile), lambda i: (0, i))
    out_spec = pl.BlockSpec((4, tile), lambda i: (0, i))   # lane-dense output

    in_specs = [
        full(freqs_col), tiled_in, tiled_in,
        full(w1T), full(b1c),
        full(w2T), full(b2c),
        full(wdT), full(bdc),
        full(wc1fT), full(wc1dT), full(bc1c),
        full(wc2T), full(bc2c),
    ]

    macs_per_pt = 12 * nh * h + 2 * h * h + 4 * h
    cost = pl.CostEstimate(
        flops=2 * macs_per_pt * n_pad,
        transcendentals=(12 * nh + 6 * h + 6) * n_pad,
        bytes_accessed=40 * n_pad)

    out = pl.pallas_call(
        _nerf_kernel,
        grid=grid,
        in_specs=in_specs,
        out_specs=out_spec,
        out_shape=jax.ShapeDtypeStruct((4, n_pad), jnp.float32),
        compiler_params=pltpu.CompilerParams(
            dimension_semantics=("parallel",)),
        cost_estimate=cost,
    )(freqs_col, pts_t, dirs_t,
      w1T, b1c, w2T, b2c,
      wdT, bdc,
      wc1fT, wc1dT, bc1c,
      wc2T, bc2c)

    densities = out[0:1, :n].T                 # [N, 1]
    colors = out[1:4, :n].T                    # [N, 3]
    return densities, colors


# ----------------------------------------------------------------------------
# Parameter init (deterministic; mirrors torch.nn.Linear default init)
# ----------------------------------------------------------------------------
def _linear_init(key, fan_in, fan_out):
    kw, kb = jax.random.split(key)
    bound = 1.0 / jnp.sqrt(float(fan_in))
    w = jax.random.uniform(kw, (fan_in, fan_out), jnp.float32, -bound, bound)
    b = jax.random.uniform(kb, (1, fan_out), jnp.float32, -bound, bound)
    return w, b


def make_params(key, n_harmonic=8, n_hidden=32, omega0=0.1):
    e = n_harmonic * 2 * 3
    h = n_hidden
    ks = jax.random.split(key, 5)
    w1, b1 = _linear_init(ks[0], e, h)
    w2, b2 = _linear_init(ks[1], h, h)
    wc1, bc1 = _linear_init(ks[2], h + e, h)
    wc2, bc2 = _linear_init(ks[3], h, 3)
    wd, bd = _linear_init(ks[4], h, 1)
    bd = bd.at[0, 0].set(-1.5)   # density_layer[0].bias.data[0] = -1.5
    freqs = (omega0 * 2.0 ** jnp.arange(n_harmonic, dtype=jnp.float32))[None, :]
    return dict(freqs=freqs, w1=w1, b1=b1, w2=w2, b2=b2,
                wd=wd, bd=bd, wc1=wc1, bc1=bc1, wc2=wc2, bc2=bc2)


# ----------------------------------------------------------------------------
# Pure-JAX reference (torch-faithful; used only for the sanity check)
# ----------------------------------------------------------------------------
def nerf_forward_ref(pts_flat, dirs_flat, params):
    freqs = params["freqs"][0]
    hp = jax.lax.Precision.HIGHEST

    def harmonic(x):
        emb = (x[..., None] * freqs).reshape(*x.shape[:-1], -1)
        return jnp.concatenate([jnp.sin(emb), jnp.cos(emb)], axis=-1)

    def softplus10(x):
        z = 10.0 * x
        return jnp.where(z > 20.0, x, jnp.log1p(jnp.exp(jnp.minimum(z, 20.0))) / 10.0)

    dot = functools.partial(jnp.dot, precision=hp)
    embeds = harmonic(pts_flat)
    h1 = softplus10(dot(embeds, params["w1"]) + params["b1"])
    feats = softplus10(dot(h1, params["w2"]) + params["b2"])
    raw_d = softplus10(dot(feats, params["wd"]) + params["bd"])
    dens = 1.0 - jnp.exp(-raw_d)
    nrm = jnp.sqrt(jnp.sum(dirs_flat * dirs_flat, axis=-1, keepdims=True))
    dirs_n = dirs_flat / jnp.maximum(nrm, 1e-12)
    cin = jnp.concatenate([feats, harmonic(dirs_n)], axis=-1)
    c1 = softplus10(dot(cin, params["wc1"]) + params["bc1"])
    cols = jax.nn.sigmoid(dot(c1, params["wc2"]) + params["bc2"])
    return dens, cols


# ----------------------------------------------------------------------------
if __name__ == "__main__":
    key = jax.random.PRNGKey(0)
    k_org, k_dir, k_len, k_par = jax.random.split(key, 4)

    # Small ray bundle: batch=2, 8 rays per batch element, 16 points per ray.
    B, R, P = 2, 8, 16
    N_HARM, N_HIDDEN = 8, 32

    origins = jax.random.normal(k_org, (B, R, 3), jnp.float32)
    directions = jax.random.normal(k_dir, (B, R, 3), jnp.float32)
    lengths = jax.random.uniform(k_len, (B, R, P), jnp.float32, 0.1, 4.0)

    params = make_params(k_par, n_harmonic=N_HARM, n_hidden=N_HIDDEN)

    # ray_bundle_to_ray_points: origins + lengths * directions -> [B, R, P, 3]
    pts = origins[:, :, None, :] + lengths[..., None] * directions[:, :, None, :]
    dirs_exp = jnp.broadcast_to(directions[:, :, None, :], pts.shape)

    n_pts = B * R * P                      # 256
    pts_flat = pts.reshape(n_pts, 3)
    dirs_flat = dirs_exp.reshape(n_pts, 3)

    dens_flat, cols_flat = nerf_forward_pallas(pts_flat, dirs_flat, params, tile=512)
    dens_flat = jax.block_until_ready(dens_flat)
    cols_flat = jax.block_until_ready(cols_flat)

    rays_densities = dens_flat.reshape(B, R, P, 1)
    rays_colors = cols_flat.reshape(B, R, P, 3)

    # Sanity check against the pure-JAX (torch-faithful) reference.
    dens_ref, cols_ref = nerf_forward_ref(pts_flat, dirs_flat, params)
    assert rays_densities.shape == (B, R, P, 1)
    assert rays_colors.shape == (B, R, P, 3)
    assert jnp.max(jnp.abs(dens_flat - dens_ref)) < 1e-2
    assert jnp.max(jnp.abs(cols_flat - cols_ref)) < 1e-2

    # TODO(synk): batched_forward is a host-side chunking wrapper over forward();
    # the point-axis grid tiling already serves that role.  Per-ray dedup of the
    # direction harmonic embedding (interface change: directions are shared by
    # the P samples of a ray) would roughly halve the remaining sin/cos EUP work
    # but is not applied here.
    print("KERNEL_OK")
</pallas_src>

<mosaic_0001>
module attributes {stable_mosaic.version = 11 : i64} {
  func.func @_nerf_kernel(%arg0: i32, %arg1: memref<8x1xf32, #tpu.memory_space<vmem>>, %arg2: memref<3x128xf32, #tpu.memory_space<vmem>>, %arg3: memref<3x128xf32, #tpu.memory_space<vmem>>, %arg4: memref<32x48xf32, #tpu.memory_space<vmem>>, %arg5: memref<32x1xf32, #tpu.memory_space<vmem>>, %arg6: memref<32x32xf32, #tpu.memory_space<vmem>>, %arg7: memref<32x1xf32, #tpu.memory_space<vmem>>, %arg8: memref<1x32xf32, #tpu.memory_space<vmem>>, %arg9: memref<1x1xf32, #tpu.memory_space<vmem>>, %arg10: memref<32x32xf32, #tpu.memory_space<vmem>>, %arg11: memref<32x48xf32, #tpu.memory_space<vmem>>, %arg12: memref<32x1xf32, #tpu.memory_space<vmem>>, %arg13: memref<3x32xf32, #tpu.memory_space<vmem>>, %arg14: memref<3x1xf32, #tpu.memory_space<vmem>>, %arg15: memref<4x128xf32, #tpu.memory_space<vmem>>) attributes {dimension_semantics = [#tpu.dimension_semantics<parallel>], iteration_bounds = array<i64: 2>, scalar_prefetch = 0 : i64, scratch_operands = 0 : i64, tpu.core_type = #tpu.core_type<tc>, window_params = [{pipeline_mode = #tpu.pipeline_mode<synchronous>, transform_indices = @transform_0, window_bounds = array<i64: 8, 1>}, {transform_indices = @transform_1, window_bounds = array<i64: 3, 128>}, {transform_indices = @transform_2, window_bounds = array<i64: 3, 128>}, {pipeline_mode = #tpu.pipeline_mode<synchronous>, transform_indices = @transform_3, window_bounds = array<i64: 32, 48>}, {pipeline_mode = #tpu.pipeline_mode<synchronous>, transform_indices = @transform_4, window_bounds = array<i64: 32, 1>}, {pipeline_mode = #tpu.pipeline_mode<synchronous>, transform_indices = @transform_5, window_bounds = array<i64: 32, 32>}, {pipeline_mode = #tpu.pipeline_mode<synchronous>, transform_indices = @transform_6, window_bounds = array<i64: 32, 1>}, {pipeline_mode = #tpu.pipeline_mode<synchronous>, transform_indices = @transform_7, window_bounds = array<i64: 1, 32>}, {pipeline_mode = #tpu.pipeline_mode<synchronous>, transform_indices = @transform_8, window_bounds = array<i64: 1, 1>}, {pipeline_mode = #tpu.pipeline_mode<synchronous>, transform_indices = @transform_9, window_bounds = array<i64: 32, 32>}, {pipeline_mode = #tpu.pipeline_mode<synchronous>, transform_indices = @transform_10, window_bounds = array<i64: 32, 48>}, {pipeline_mode = #tpu.pipeline_mode<synchronous>, transform_indices = @transform_11, window_bounds = array<i64: 32, 1>}, {pipeline_mode = #tpu.pipeline_mode<synchronous>, transform_indices = @transform_12, window_bounds = array<i64: 3, 32>}, {pipeline_mode = #tpu.pipeline_mode<synchronous>, transform_indices = @transform_13, window_bounds = array<i64: 3, 1>}, {transform_indices = @transform_14, window_bounds = array<i64: 4, 128>}]} {
    %c0 = arith.constant 0 : index
    %c0_0 = arith.constant 0 : index
    %0 = vector.load %arg1[%c0, %c0_0] : memref<8x1xf32, #tpu.memory_space<vmem>>, vector<8x1xf32>
    %c0_1 = arith.constant 0 : index
    %c0_2 = arith.constant 0 : index
    %1 = vector.load %arg2[%c0_1, %c0_2] : memref<3x128xf32, #tpu.memory_space<vmem>>, vector<3x128xf32>
    %c0_3 = arith.constant 0 : index
    %c0_4 = arith.constant 0 : index
    %2 = vector.load %arg3[%c0_3, %c0_4] : memref<3x128xf32, #tpu.memory_space<vmem>>, vector<3x128xf32>
    %3 = vector.extract_strided_slice %1 {offsets = [0, 0], sizes = [1, 128], strides = [1, 1]} : vector<3x128xf32> to vector<1x128xf32>
    %4 = vector.broadcast %0 : vector<8x1xf32> to vector<8x128xf32>
    %5 = vector.broadcast %3 : vector<1x128xf32> to vector<8x128xf32>
    %6 = arith.mulf %4, %5 : vector<8x128xf32>
    %7 = vector.extract_strided_slice %1 {offsets = [1, 0], sizes = [1, 128], strides = [1, 1]} : vector<3x128xf32> to vector<1x128xf32>
    %8 = vector.broadcast %0 : vector<8x1xf32> to vector<8x128xf32>
    %9 = vector.broadcast %7 : vector<1x128xf32> to vector<8x128xf32>
    %10 = arith.mulf %8, %9 : vector<8x128xf32>
    %11 = vector.extract_strided_slice %1 {offsets = [2, 0], sizes = [1, 128], strides = [1, 1]} : vector<3x128xf32> to vector<1x128xf32>
    %12 = vector.broadcast %0 : vector<8x1xf32> to vector<8x128xf32>
    %13 = vector.broadcast %11 : vector<1x128xf32> to vector<8x128xf32>
    %14 = arith.mulf %12, %13 : vector<8x128xf32>
    %15 = math.sin %6 : vector<8x128xf32>
    %16 = math.sin %10 : vector<8x128xf32>
    %17 = math.sin %14 : vector<8x128xf32>
    %18 = math.cos %6 : vector<8x128xf32>
    %19 = math.cos %10 : vector<8x128xf32>
    %20 = math.cos %14 : vector<8x128xf32>
    %21 = tpu.concatenate %15, %16, %17, %18, %19, %20 in 0 : vector<8x128xf32>, vector<8x128xf32>, vector<8x128xf32>, vector<8x128xf32>, vector<8x128xf32>, vector<8x128xf32> -> vector<48x128xf32>
    %c0_5 = arith.constant 0 : index
    %c0_6 = arith.constant 0 : index
    %22 = vector.load %arg4[%c0_5, %c0_6] : memref<32x48xf32, #tpu.memory_space<vmem>>, vector<32x48xf32>
    %cst = arith.constant dense<0.000000e+00> : vector<32x128xf32>
    %23 = tpu.matmul %22, %21, %cst {dimension_numbers = #tpu.dot_dimension_numbers<[1], [0], [0], [1], [0, 0, 1, 1], [], []>} : vector<32x48xf32>, vector<48x128xf32>, vector<32x128xf32> -> vector<32x128xf32>
    %c0_7 = arith.constant 0 : index
    %c0_8 = arith.constant 0 : index
    %24 = vector.load %arg5[%c0_7, %c0_8] : memref<32x1xf32, #tpu.memory_space<vmem>>, vector<32x1xf32>
    %25 = vector.broadcast %24 : vector<32x1xf32> to vector<32x128xf32>
    %26 = arith.addf %23, %25 : vector<32x128xf32>
    %cst_9 = arith.constant 1.000000e+01 : f32
    %27 = vector.broadcast %cst_9 : f32 to vector<32x128xf32>
    %28 = arith.mulf %27, %26 : vector<32x128xf32>
    %cst_10 = arith.constant 2.000000e+01 : f32
    %29 = vector.broadcast %cst_10 : f32 to vector<32x128xf32>
    %30 = arith.cmpf ogt, %28, %29 : vector<32x128xf32>
    %cst_11 = arith.constant 2.000000e+01 : f32
    %31 = vector.broadcast %cst_11 : f32 to vector<32x128xf32>
    %32 = arith.minimumf %28, %31 : vector<32x128xf32>
    %33 = math.exp %32 : vector<32x128xf32>
    %34 = math.log1p %33 : vector<32x128xf32>
    %cst_12 = arith.constant 1.000000e+01 : f32
    %35 = vector.broadcast %cst_12 : f32 to vector<32x128xf32>
    %36 = arith.divf %34, %35 : vector<32x128xf32>
    %37 = arith.select %30, %26, %36 : vector<32x128xi1>, vector<32x128xf32>
    %c0_13 = arith.constant 0 : index
    %c0_14 = arith.constant 0 : index
    %38 = vector.load %arg6[%c0_13, %c0_14] : memref<32x32xf32, #tpu.memory_space<vmem>>, vector<32x32xf32>
    %cst_15 = arith.constant dense<0.000000e+00> : vector<32x128xf32>
    %39 = tpu.matmul %38, %37, %cst_15 {dimension_numbers = #tpu.dot_dimension_numbers<[1], [0], [0], [1], [0, 0, 1, 1], [], []>} : vector<32x32xf32>, vector<32x128xf32>, vector<32x128xf32> -> vector<32x128xf32>
    %c0_16 = arith.constant 0 : index
    %c0_17 = arith.constant 0 : index
    %40 = vector.load %arg7[%c0_16, %c0_17] : memref<32x1xf32, #tpu.memory_space<vmem>>, vector<32x1xf32>
    %41 = vector.broadcast %40 : vector<32x1xf32> to vector<32x128xf32>
    %42 = arith.addf %39, %41 : vector<32x128xf32>
    %cst_18 = arith.constant 1.000000e+01 : f32
    %43 = vector.broadcast %cst_18 : f32 to vector<32x128xf32>
    %44 = arith.mulf %43, %42 : vector<32x128xf32>
    %cst_19 = arith.constant 2.000000e+01 : f32
    %45 = vector.broadcast %cst_19 : f32 to vector<32x128xf32>
    %46 = arith.cmpf ogt, %44, %45 : vector<32x128xf32>
    %cst_20 = arith.constant 2.000000e+01 : f32
    %47 = vector.broadcast %cst_20 : f32 to vector<32x128xf32>
    %48 = arith.minimumf %44, %47 : vector<32x128xf32>
    %49 = math.exp %48 : vector<32x128xf32>
    %50 = math.log1p %49 : vector<32x128xf32>
    %cst_21 = arith.constant 1.000000e+01 : f32
    %51 = vector.broadcast %cst_21 : f32 to vector<32x128xf32>
    %52 = arith.divf %50, %51 : vector<32x128xf32>
    %53 = arith.select %46, %42, %52 : vector<32x128xi1>, vector<32x128xf32>
    %c0_22 = arith.constant 0 : index
    %c0_23 = arith.constant 0 : index
    %54 = vector.load %arg8[%c0_22, %c0_23] : memref<1x32xf32, #tpu.memory_space<vmem>>, vector<1x32xf32>
    %cst_24 = arith.constant dense<0.000000e+00> : vector<1x128xf32>
    %55 = tpu.matmul %54, %53, %cst_24 {dimension_numbers = #tpu.dot_dimension_numbers<[1], [0], [0], [1], [0, 0, 1, 1], [], []>} : vector<1x32xf32>, vector<32x128xf32>, vector<1x128xf32> -> vector<1x128xf32>
    %c0_25 = arith.constant 0 : index
    %c0_26 = arith.constant 0 : index
    %56 = vector.load %arg9[%c0_25, %c0_26] : memref<1x1xf32, #tpu.memory_space<vmem>>, vector<1x1xf32>
    %57 = vector.broadcast %56 : vector<1x1xf32> to vector<1x128xf32>
    %58 = arith.addf %55, %57 : vector<1x128xf32>
    %cst_27 = arith.constant 1.000000e+01 : f32
    %59 = vector.broadcast %cst_27 : f32 to vector<1x128xf32>
    %60 = arith.mulf %59, %58 : vector<1x128xf32>
    %cst_28 = arith.constant 2.000000e+01 : f32
    %61 = vector.broadcast %cst_28 : f32 to vector<1x128xf32>
    %62 = arith.cmpf ogt, %60, %61 : vector<1x128xf32>
    %cst_29 = arith.constant 2.000000e+01 : f32
    %63 = vector.broadcast %cst_29 : f32 to vector<1x128xf32>
    %64 = arith.minimumf %60, %63 : vector<1x128xf32>
    %65 = math.exp %64 : vector<1x128xf32>
    %66 = math.log1p %65 : vector<1x128xf32>
    %cst_30 = arith.constant 1.000000e+01 : f32
    %67 = vector.broadcast %cst_30 : f32 to vector<1x128xf32>
    %68 = arith.divf %66, %67 : vector<1x128xf32>
    %69 = arith.select %62, %58, %68 : vector<1x128xi1>, vector<1x128xf32>
    %cst_31 = arith.constant 0.000000e+00 : f32
    %70 = vector.broadcast %cst_31 : f32 to vector<1x128xf32>
    %71 = arith.subf %70, %69 : vector<1x128xf32>
    %72 = math.exp %71 : vector<1x128xf32>
    %cst_32 = arith.constant 1.000000e+00 : f32
    %73 = vector.broadcast %cst_32 : f32 to vector<1x128xf32>
    %74 = arith.subf %73, %72 : vector<1x128xf32>
    %c0_33 = arith.constant 0 : index
    %c0_34 = arith.constant 0 : index
    %75 = vector.load %arg15[%c0_33, %c0_34] : memref<4x128xf32, #tpu.memory_space<vmem>>, vector<1x128xf32>
    tpu.vector_store %arg15[%c0_33, %c0_34], %74 {strides = array<i32>} : memref<4x128xf32, #tpu.memory_space<vmem>>, vector<1x128xf32>,
    %76 = arith.mulf %2, %2 : vector<3x128xf32>
    %cst_35 = arith.constant dense<0.000000e+00> : vector<128xf32>
    %77 = vector.multi_reduction <add>, %76, %cst_35 [0] : vector<3x128xf32> to vector<128xf32>
    %78 = vector.shape_cast %77 : vector<128xf32> to vector<1x128xf32>
    %cst_36 = arith.constant 1.000000e-24 : f32
    %79 = vector.broadcast %cst_36 : f32 to vector<1x128xf32>
    %80 = arith.maximumf %78, %79 : vector<1x128xf32>
    %81 = math.rsqrt %80 : vector<1x128xf32>
    %82 = vector.broadcast %81 : vector<1x128xf32> to vector<3x128xf32>
    %83 = arith.mulf %2, %82 : vector<3x128xf32>
    %84 = vector.extract_strided_slice %83 {offsets = [0, 0], sizes = [1, 128], strides = [1, 1]} : vector<3x128xf32> to vector<1x128xf32>
    %85 = vector.broadcast %0 : vector<8x1xf32> to vector<8x128xf32>
    %86 = vector.broadcast %84 : vector<1x128xf32> to vector<8x128xf32>
    %87 = arith.mulf %85, %86 : vector<8x128xf32>
    %88 = vector.extract_strided_slice %83 {offsets = [1, 0], sizes = [1, 128], strides = [1, 1]} : vector<3x128xf32> to vector<1x128xf32>
    %89 = vector.broadcast %0 : vector<8x1xf32> to vector<8x128xf32>
    %90 = vector.broadcast %88 : vector<1x128xf32> to vector<8x128xf32>
    %91 = arith.mulf %89, %90 : vector<8x128xf32>
    %92 = vector.extract_strided_slice %83 {offsets = [2, 0], sizes = [1, 128], strides = [1, 1]} : vector<3x128xf32> to vector<1x128xf32>
    %93 = vector.broadcast %0 : vector<8x1xf32> to vector<8x128xf32>
    %94 = vector.broadcast %92 : vector<1x128xf32> to vector<8x128xf32>
    %95 = arith.mulf %93, %94 : vector<8x128xf32>
    %96 = math.sin %87 : vector<8x128xf32>
    %97 = math.sin %91 : vector<8x128xf32>
    %98 = math.sin %95 : vector<8x128xf32>
    %99 = math.cos %87 : vector<8x128xf32>
    %100 = math.cos %91 : vector<8x128xf32>
    %101 = math.cos %95 : vector<8x128xf32>
    %102 = tpu.concatenate %96, %97, %98, %99, %100, %101 in 0 : vector<8x128xf32>, vector<8x128xf32>, vector<8x128xf32>, vector<8x128xf32>, vector<8x128xf32>, vector<8x128xf32> -> vector<48x128xf32>
    %c0_37 = arith.constant 0 : index
    %c0_38 = arith.constant 0 : index
    %103 = vector.load %arg10[%c0_37, %c0_38] : memref<32x32xf32, #tpu.memory_space<vmem>>, vector<32x32xf32>
    %cst_39 = arith.constant dense<0.000000e+00> : vector<32x128xf32>
    %104 = tpu.matmul %103, %53, %cst_39 {dimension_numbers = #tpu.dot_dimension_numbers<[1], [0], [0], [1], [0, 0, 1, 1], [], []>} : vector<32x32xf32>, vector<32x128xf32>, vector<32x128xf32> -> vector<32x128xf32>
    %c0_40 = arith.constant 0 : index
    %c0_41 = arith.constant 0 : index
    %105 = vector.load %arg11[%c0_40, %c0_41] : memref<32x48xf32, #tpu.memory_space<vmem>>, vector<32x48xf32>
    %cst_42 = arith.constant dense<0.000000e+00> : vector<32x128xf32>
    %106 = tpu.matmul %105, %102, %cst_42 {dimension_numbers = #tpu.dot_dimension_numbers<[1], [0], [0], [1], [0, 0, 1, 1], [], []>} : vector<32x48xf32>, vector<48x128xf32>, vector<32x128xf32> -> vector<32x128xf32>
    %107 = arith.addf %104, %106 : vector<32x128xf32>
    %c0_43 = arith.constant 0 : index
    %c0_44 = arith.constant 0 : index
    %108 = vector.load %arg12[%c0_43, %c0_44] : memref<32x1xf32, #tpu.memory_space<vmem>>, vector<32x1xf32>
    %109 = vector.broadcast %108 : vector<32x1xf32> to vector<32x128xf32>
    %110 = arith.addf %107, %109 : vector<32x128xf32>
    %cst_45 = arith.constant 1.000000e+01 : f32
    %111 = vector.broadcast %cst_45 : f32 to vector<32x128xf32>
    %112 = arith.mulf %111, %110 : vector<32x128xf32>
    %cst_46 = arith.constant 2.000000e+01 : f32
    %113 = vector.broadcast %cst_46 : f32 to vector<32x128xf32>
    %114 = arith.cmpf ogt, %112, %113 : vector<32x128xf32>
    %cst_47 = arith.constant 2.000000e+01 : f32
    %115 = vector.broadcast %cst_47 : f32 to vector<32x128xf32>
    %116 = arith.minimumf %112, %115 : vector<32x128xf32>
    %117 = math.exp %116 : vector<32x128xf32>
    %118 = math.log1p %117 : vector<32x128xf32>
    %cst_48 = arith.constant 1.000000e+01 : f32
    %119 = vector.broadcast %cst_48 : f32 to vector<32x128xf32>
    %120 = arith.divf %118, %119 : vector<32x128xf32>
    %121 = arith.select %114, %110, %120 : vector<32x128xi1>, vector<32x128xf32>
    %c0_49 = arith.constant 0 : index
    %c0_50 = arith.constant 0 : index
    %122 = vector.load %arg13[%c0_49, %c0_50] : memref<3x32xf32, #tpu.memory_space<vmem>>, vector<3x32xf32>
    %cst_51 = arith.constant dense<0.000000e+00> : vector<3x128xf32>
    %123 = tpu.matmul %122, %121, %cst_51 {dimension_numbers = #tpu.dot_dimension_numbers<[1], [0], [0], [1], [0, 0, 1, 1], [], []>} : vector<3x32xf32>, vector<32x128xf32>, vector<3x128xf32> -> vector<3x128xf32>
    %c0_52 = arith.constant 0 : index
    %c0_53 = arith.constant 0 : index
    %124 = vector.load %arg14[%c0_52, %c0_53] : memref<3x1xf32, #tpu.memory_space<vmem>>, vector<3x1xf32>
    %125 = vector.broadcast %124 : vector<3x1xf32> to vector<3x128xf32>
    %126 = arith.addf %123, %125 : vector<3x128xf32>
    %127 = arith.negf %126 : vector<3x128xf32>
    %128 = math.exp %127 : vector<3x128xf32>
    %cst_54 = arith.constant 1.000000e+00 : f32
    %129 = vector.broadcast %cst_54 : f32 to vector<3x128xf32>
    %130 = arith.addf %129, %128 : vector<3x128xf32>
    %131 = arith.divf %129, %130 : vector<3x128xf32>
    %c1 = arith.constant 1 : index
    %c0_55 = arith.constant 0 : index
    %132 = vector.load %arg15[%c1, %c0_55] : memref<4x128xf32, #tpu.memory_space<vmem>>, vector<3x128xf32>
    tpu.vector_store %arg15[%c1, %c0_55], %131 {strides = array<i32>} : memref<4x128xf32, #tpu.memory_space<vmem>>, vector<3x128xf32>,
    return
  }
  func.func @transform_0(%arg0: i32) -> (i32, i32) {
    %c0_i32 = arith.constant 0 : i32
    %c0_i32_0 = arith.constant 0 : i32
    %c0_i32_1 = arith.constant 0 : i32
    return %c0_i32, %c0_i32_0 : i32, i32
  }
  func.func @transform_1(%arg0: i32) -> (i32, i32) {
    %c0_i32 = arith.constant 0 : i32
    %c0_i32_0 = arith.constant 0 : i32
    return %c0_i32, %arg0 : i32, i32
  }
  func.func @transform_2(%arg0: i32) -> (i32, i32) {
    %c0_i32 = arith.constant 0 : i32
    %c0_i32_0 = arith.constant 0 : i32
    return %c0_i32, %arg0 : i32, i32
  }
  func.func @transform_3(%arg0: i32) -> (i32, i32) {
    %c0_i32 = arith.constant 0 : i32
    %c0_i32_0 = arith.constant 0 : i32
    %c0_i32_1 = arith.constant 0 : i32
    return %c0_i32, %c0_i32_0 : i32, i32
  }
  func.func @transform_4(%arg0: i32) -> (i32, i32) {
    %c0_i32 = arith.constant 0 : i32
    %c0_i32_0 = arith.constant 0 : i32
    %c0_i32_1 = arith.constant 0 : i32
    return %c0_i32, %c0_i32_0 : i32, i32
  }
  func.func @transform_5(%arg0: i32) -> (i32, i32) {
    %c0_i32 = arith.constant 0 : i32
    %c0_i32_0 = arith.constant 0 : i32
    %c0_i32_1 = arith.constant 0 : i32
    return %c0_i32, %c0_i32_0 : i32, i32
  }
  func.func @transform_6(%arg0: i32) -> (i32, i32) {
    %c0_i32 = arith.constant 0 : i32
    %c0_i32_0 = arith.constant 0 : i32
    %c0_i32_1 = arith.constant 0 : i32
    return %c0_i32, %c0_i32_0 : i32, i32
  }
  func.func @transform_7(%arg0: i32) -> (i32, i32) {
    %c0_i32 = arith.constant 0 : i32
    %c0_i32_0 = arith.constant 0 : i32
    %c0_i32_1 = arith.constant 0 : i32
    return %c0_i32, %c0_i32_0 : i32, i32
  }
  func.func @transform_8(%arg0: i32) -> (i32, i32) {
    %c0_i32 = arith.constant 0 : i32
    %c0_i32_0 = arith.constant 0 : i32
    %c0_i32_1 = arith.constant 0 : i32
    return %c0_i32, %c0_i32_0 : i32, i32
  }
  func.func @transform_9(%arg0: i32) -> (i32, i32) {
    %c0_i32 = arith.constant 0 : i32
    %c0_i32_0 = arith.constant 0 : i32
    %c0_i32_1 = arith.constant 0 : i32
    return %c0_i32, %c0_i32_0 : i32, i32
  }
  func.func @transform_10(%arg0: i32) -> (i32, i32) {
    %c0_i32 = arith.constant 0 : i32
    %c0_i32_0 = arith.constant 0 : i32
    %c0_i32_1 = arith.constant 0 : i32
    return %c0_i32, %c0_i32_0 : i32, i32
  }
  func.func @transform_11(%arg0: i32) -> (i32, i32) {
    %c0_i32 = arith.constant 0 : i32
    %c0_i32_0 = arith.constant 0 : i32
    %c0_i32_1 = arith.constant 0 : i32
    return %c0_i32, %c0_i32_0 : i32, i32
  }
  func.func @transform_12(%arg0: i32) -> (i32, i32) {
    %c0_i32 = arith.constant 0 : i32
    %c0_i32_0 = arith.constant 0 : i32
    %c0_i32_1 = arith.constant 0 : i32
    return %c0_i32, %c0_i32_0 : i32, i32
  }
  func.func @transform_13(%arg0: i32) -> (i32, i32) {
    %c0_i32 = arith.constant 0 : i32
    %c0_i32_0 = arith.constant 0 : i32
    %c0_i32_1 = arith.constant 0 : i32
    return %c0_i32, %c0_i32_0 : i32, i32
  }
  func.func @transform_14(%arg0: i32) -> (i32, i32) {
    %c0_i32 = arith.constant 0 : i32
    %c0_i32_0 = arith.constant 0 : i32
    return %c0_i32, %arg0 : i32, i32
  }
}

</mosaic_0001>

<llo_original>
// kernel: tpu_custom_call.1
$region0: #{tpu_custom_call.1}
  #allocation0 [shape = 'u32[]', space=smem, size = 0x4, offset = 0x4, fixed_abs, tag = 'smem constant byte address 0x4 - core index']
  #allocation1 [shape = 'u32[144,128]{1,0:T(1,128)}', space=vmem, size = 0x12000, scoped, tag = 'internal scratch']
  #allocation2 [shape = 'f32[1,1]{1,0:T(1,128)S(1)}', space=vmem, size = 0x200, scoped, tag = 'scoped memory for tpu_custom_call.1']
  %s0 = inlined_call_operand.vmem [shape: f32[8,1], index: 0, kind: input, shape index: {}]
  %s1 = inlined_call_operand.hbm [shape: f32[3,256], index: 1, kind: input, shape index: {}]
  %s2 = inlined_call_operand.hbm [shape: f32[3,256], index: 2, kind: input, shape index: {}]
  %s3 = inlined_call_operand.vmem [shape: f32[32,48], index: 3, kind: input, shape index: {}]
  %s4 = inlined_call_operand.vmem [shape: f32[32,1], index: 4, kind: input, shape index: {}]
  %s5 = inlined_call_operand.vmem [shape: f32[32,32], index: 5, kind: input, shape index: {}]
  %s6 = inlined_call_operand.vmem [shape: f32[32,1], index: 6, kind: input, shape index: {}]
  %s7 = inlined_call_operand.vmem [shape: f32[1,32], index: 7, kind: input, shape index: {}]
  %s8 = inlined_call_operand.<no memory space> [shape: f32[1,1], index: 8, kind: input, shape index: {}]
  %s9 = inlined_call_operand.vmem [shape: f32[32,32], index: 9, kind: input, shape index: {}]
  %s10 = inlined_call_operand.vmem [shape: f32[32,48], index: 10, kind: input, shape index: {}]
  %s11 = inlined_call_operand.vmem [shape: f32[32,1], index: 11, kind: input, shape index: {}]
  %s12 = inlined_call_operand.vmem [shape: f32[3,32], index: 12, kind: input, shape index: {}]
  %s13 = inlined_call_operand.vmem [shape: f32[3,1], index: 13, kind: input, shape index: {}]
  %s14 = inlined_call_operand.hbm [shape: f32[4,256], index: 14, kind: output, shape index: {}]
  %s15 = sld [smem:[#allocation0]]
  $region97: #{tpu_custom_call.1} parent=0
    _
  %s17 = ssub.s32 1, %s15
  %s18 = scalar_select 0, %s17, %s15
  %v19 = vstv %s8
  %20 = vst [vmem:[#allocation2] sm:$0x1] %v19
  $region1: #{tpu_custom_call.1} parent=0
    #allocation3 [shape = 'u8[4096]{0}', space=vmem, size = 0x1000, scoped, tag = 'input window, operand 1']
    #allocation4 [shape = 's32[2]{0}', space=sflag, size = 0x8, scoped, tag = 'scoped memory for tpu_custom_call.1']
    #allocation5 [shape = 's32[2]{0}', space=sflag, size = 0x8, scoped, tag = 'scoped memory for tpu_custom_call.1']
    #allocation6 [shape = 'u8[4096]{0}', space=vmem, size = 0x1000, scoped, tag = 'input window, operand 2']
    #allocation7 [shape = 's32[2]{0}', space=sflag, size = 0x8, scoped, tag = 'scoped memory for tpu_custom_call.1']
    #allocation8 [shape = 'u8[4096]{0}', space=vmem, size = 0x1000, scoped, tag = 'output window, operand 0']
    %21 = vsyncpa [#allocation4], 0
    %s22 = scalar_lea.sflag [#allocation4], 1
    %23 = vsyncpa %s22, 0
    %24 = vsyncpa [#allocation7], 0
    %s25 = scalar_lea.sflag [#allocation7], 1
    %26 = vsyncpa %s25, 0
    %27 = vsyncpa [#allocation5], 0
    %s28 = scalar_lea.sflag [#allocation5], 1
    %29 = vsyncpa %s28, 0
    loop: start=0, step=1, limit=4
    $region2: #{tpu_custom_call.1} parent=1 // loop_pre_header
      _
    $region3: #{tpu_custom_call.1} parent=1 // loop_header
      %s31 = sphi 0, %s35
      %p32 = scmp.ge.s32.totalorder %s31, 4
      %s39 = sphi 0, %s39
      %s41 = sphi 0, %s39
      %s42 = sphi 0, %s41
      %s56 = sphi 0, %s42
      %s62 = sphi 0, %s64
      %s65 = sphi 0, %s62
      %s66 = sphi 0, %s65
      %s82 = sphi 0, %s66
      %s88 = sphi 0, %s90
      %s91 = sphi 0, %s88
      %s92 = sphi 0, %s91
      %s108 = sphi 0, %s92
      %s112 = sphi 0, %s112
      %s114 = sphi 0, %s112
      %s115 = sphi 0, %s114
      %s129 = sphi 0, %s115
      %s133 = sphi 0, %s133
      %s135 = sphi 0, %s133
      %s136 = sphi 0, %s135
      %s150 = sphi 0, %s136
      %s154 = sphi 0, %s154
      %s156 = sphi 0, %s154
      %s157 = sphi 0, %s156
      %s171 = sphi 0, %s157
      %s175 = sphi 0, %s175
      %s177 = sphi 0, %s175
      %s178 = sphi 0, %s177
      %s192 = sphi 0, %s178
      %s196 = sphi 0, %s196
      %s198 = sphi 0, %s196
      %s199 = sphi 0, %s198
      %s213 = sphi 0, %s199
      %s217 = sphi 0, %s217
      %s219 = sphi 0, %s217
      %s220 = sphi 0, %s219
      %s234 = sphi 0, %s220
      %s238 = sphi 0, %s238
      %s240 = sphi 0, %s238
      %s241 = sphi 0, %s240
      %s255 = sphi 0, %s241
      %s259 = sphi 0, %s259
      %s261 = sphi 0, %s259
      %s262 = sphi 0, %s261
      %s276 = sphi 0, %s262
      %s280 = sphi 0, %s280
      %s282 = sphi 0, %s280
      %s283 = sphi 0, %s282
      %s297 = sphi 0, %s283
      %s301 = sphi 0, %s301
      %s303 = sphi 0, %s301
      %s304 = sphi 0, %s303
      %s318 = sphi 0, %s304
      %s322 = sphi 0, %s322
      %s324 = sphi 0, %s322
      %s325 = sphi 0, %s324
      %s339 = sphi 0, %s325
      %s345 = sphi 0, %s347
      %s348 = sphi 0, %s345
      %s349 = sphi 0, %s348
      %s365 = sphi 0, %s349
    $region4: #{tpu_custom_call.1} parent=1 // loop_header_branch
      %34 = sbr.rel (%p32) target = $region8
    $region5: #{tpu_custom_call.1} parent=1 // loop_body
      %s36 = ssub.s32 %s31, 1
      %s37 = ssub.s32 %s31, 2
      %s38 = sadd.s32 %s31, 1
      %s40 = sadd.s32 %s39, 1
      %p43 = scmp.eq.s32.totalorder %s31, 1
      %p44 = scmp.ne.s32.totalorder %s39, %s41
      %p45 = scmp.eq.s32.totalorder %s31, 0
      %p46 = por %p44, %p45
      %p47 = scmp.ne.s32.totalorder %s39, %s41
      %p48 = scmp.eq.s32.totalorder %s36, 1
      %p49 = por %p47, %p48
      %p50 = scmp.ne.s32.totalorder %s41, %s42
      %p51 = scmp.eq.s32.totalorder %s36, 0
      %p52 = por %p50, %p51
      %p53 = scmp.ne.s32.totalorder %s41, %s42
      %p54 = scmp.eq.s32.totalorder %s37, 1
      %p55 = por %p53, %p54
      %p57 = scmp.ne.s32.totalorder %s42, %s56
      %p58 = scmp.eq.s32.totalorder %s37, 0
      %p59 = por %p57, %p58
      %s60 = ssub.s32 %s31, %s38
      %p61 = scmp.eq.s32.totalorder %s60, 0
      %s63 = sadd.s32 %s62, 1
      %s64 = scalar_select %p61, %s62, %s63
      %p67 = pneg %p61
      %p68 = scmp.eq.s32.totalorder %s31, 1
      %p69 = por %p67, %p68
      %p70 = scmp.ne.s32.totalorder %s62, %s65
      %p71 = scmp.eq.s32.totalorder %s31, 0
      %p72 = por %p70, %p71
      %p73 = scmp.ne.s32.totalorder %s62, %s65
      %p74 = scmp.eq.s32.totalorder %s36, 1
      %p75 = por %p73, %p74
      %p76 = scmp.ne.s32.totalorder %s65, %s66
      %p77 = scmp.eq.s32.totalorder %s36, 0
      %p78 = por %p76, %p77
      %p79 = scmp.ne.s32.totalorder %s65, %s66
      %p80 = scmp.eq.s32.totalorder %s37, 1
      %p81 = por %p79, %p80
      %p83 = scmp.ne.s32.totalorder %s66, %s82
      %p84 = scmp.eq.s32.totalorder %s37, 0
      %p85 = por %p83, %p84
      %s86 = ssub.s32 %s31, %s38
      %p87 = scmp.eq.s32.totalorder %s86, 0
      %s89 = sadd.s32 %s88, 1
      %s90 = scalar_select %p87, %s88, %s89
      %p93 = pneg %p87
      %p94 = scmp.eq.s32.totalorder %s31, 1
      %p95 = por %p93, %p94
      %p96 = scmp.ne.s32.totalorder %s88, %s91
      %p97 = scmp.eq.s32.totalorder %s31, 0
      %p98 = por %p96, %p97
      %p99 = scmp.ne.s32.totalorder %s88, %s91
      %p100 = scmp.eq.s32.totalorder %s36, 1
      %p101 = por %p99, %p100
      %p102 = scmp.ne.s32.totalorder %s91, %s92
      %p103 = scmp.eq.s32.totalorder %s36, 0
      %p104 = por %p102, %p103
      %p105 = scmp.ne.s32.totalorder %s91, %s92
      %p106 = scmp.eq.s32.totalorder %s37, 1
      %p107 = por %p105, %p106
      %p109 = scmp.ne.s32.totalorder %s92, %s108
      %p110 = scmp.eq.s32.totalorder %s37, 0
      %p111 = por %p109, %p110
      %s113 = sadd.s32 %s112, 1
      %p116 = scmp.eq.s32.totalorder %s31, 1
      %p117 = scmp.ne.s32.totalorder %s112, %s114
      %p118 = scmp.eq.s32.totalorder %s31, 0
      %p119 = por %p117, %p118
      %p120 = scmp.ne.s32.totalorder %s112, %s114
      %p121 = scmp.eq.s32.totalorder %s36, 1
      %p122 = por %p120, %p121
      %p123 = scmp.ne.s32.totalorder %s114, %s115
      %p124 = scmp.eq.s32.totalorder %s36, 0
      %p125 = por %p123, %p124
      %p126 = scmp.ne.s32.totalorder %s114, %s115
      %p127 = scmp.eq.s32.totalorder %s37, 1
      %p128 = por %p126, %p127
      %p130 = scmp.ne.s32.totalorder %s115, %s129
      %p131 = scmp.eq.s32.totalorder %s37, 0
      %p132 = por %p130, %p131
      %s134 = sadd.s32 %s133, 1
      %p137 = scmp.eq.s32.totalorder %s31, 1
      %p138 = scmp.ne.s32.totalorder %s133, %s135
      %p139 = scmp.eq.s32.totalorder %s31, 0
      %p140 = por %p138, %p139
      %p141 = scmp.ne.s32.totalorder %s133, %s135
      %p142 = scmp.eq.s32.totalorder %s36, 1
      %p143 = por %p141, %p142
      %p144 = scmp.ne.s32.totalorder %s135, %s136
      %p145 = scmp.eq.s32.totalorder %s36, 0
      %p146 = por %p144, %p145
      %p147 = scmp.ne.s32.totalorder %s135, %s136
      %p148 = scmp.eq.s32.totalorder %s37, 1
      %p149 = por %p147, %p148
      %p151 = scmp.ne.s32.totalorder %s136, %s150
      %p152 = scmp.eq.s32.totalorder %s37, 0
      %p153 = por %p151, %p152
      %s155 = sadd.s32 %s154, 1
      %p158 = scmp.eq.s32.totalorder %s31, 1
      %p159 = scmp.ne.s32.totalorder %s154, %s156
      %p160 = scmp.eq.s32.totalorder %s31, 0
      %p161 = por %p159, %p160
      %p162 = scmp.ne.s32.totalorder %s154, %s156
      %p163 = scmp.eq.s32.totalorder %s36, 1
      %p164 = por %p162, %p163
      %p165 = scmp.ne.s32.totalorder %s156, %s157
      %p166 = scmp.eq.s32.totalorder %s36, 0
      %p167 = por %p165, %p166
      %p168 = scmp.ne.s32.totalorder %s156, %s157
      %p169 = scmp.eq.s32.totalorder %s37, 1
      %p170 = por %p168, %p169
      %p172 = scmp.ne.s32.totalorder %s157, %s171
      %p173 = scmp.eq.s32.totalorder %s37, 0
      %p174 = por %p172, %p173
      %s176 = sadd.s32 %s175, 1
      %p179 = scmp.eq.s32.totalorder %s31, 1
      %p180 = scmp.ne.s32.totalorder %s175, %s177
      %p181 = scmp.eq.s32.totalorder %s31, 0
      %p182 = por %p180, %p181
      %p183 = scmp.ne.s32.totalorder %s175, %s177
      %p184 = scmp.eq.s32.totalorder %s36, 1
      %p185 = por %p183, %p184
      %p186 = scmp.ne.s32.totalorder %s177, %s178
      %p187 = scmp.eq.s32.totalorder %s36, 0
      %p188 = por %p186, %p187
      %p189 = scmp.ne.s32.totalorder %s177, %s178
      %p190 = scmp.eq.s32.totalorder %s37, 1
      %p191 = por %p189, %p190
      %p193 = scmp.ne.s32.totalorder %s178, %s192
      %p194 = scmp.eq.s32.totalorder %s37, 0
      %p195 = por %p193, %p194
      %s197 = sadd.s32 %s196, 1
      %p200 = scmp.eq.s32.totalorder %s31, 1
      %p201 = scmp.ne.s32.totalorder %s196, %s198
      %p202 = scmp.eq.s32.totalorder %s31, 0
      %p203 = por %p201, %p202
      %p204 = scmp.ne.s32.totalorder %s196, %s198
      %p205 = scmp.eq.s32.totalorder %s36, 1
      %p206 = por %p204, %p205
      %p207 = scmp.ne.s32.totalorder %s198, %s199
      %p208 = scmp.eq.s32.totalorder %s36, 0
      %p209 = por %p207, %p208
      %p210 = scmp.ne.s32.totalorder %s198, %s199
      %p211 = scmp.eq.s32.totalorder %s37, 1
      %p212 = por %p210, %p211
      %p214 = scmp.ne.s32.totalorder %s199, %s213
      %p215 = scmp.eq.s32.totalorder %s37, 0
      %p216 = por %p214, %p215
      %s218 = sadd.s32 %s217, 1
      %p221 = scmp.eq.s32.totalorder %s31, 1
      %p222 = scmp.ne.s32.totalorder %s217, %s219
      %p223 = scmp.eq.s32.totalorder %s31, 0
      %p224 = por %p222, %p223
      %p225 = scmp.ne.s32.totalorder %s217, %s219
      %p226 = scmp.eq.s32.totalorder %s36, 1
      %p227 = por %p225, %p226
      %p228 = scmp.ne.s32.totalorder %s219, %s220
      %p229 = scmp.eq.s32.totalorder %s36, 0
      %p230 = por %p228, %p229
      %p231 = scmp.ne.s32.totalorder %s219, %s220
      %p232 = scmp.eq.s32.totalorder %s37, 1
      %p233 = por %p231, %p232
      %p235 = scmp.ne.s32.totalorder %s220, %s234
      %p236 = scmp.eq.s32.totalorder %s37, 0
      %p237 = por %p235, %p236
      %s239 = sadd.s32 %s238, 1
      %p242 = scmp.eq.s32.totalorder %s31, 1
      %p243 = scmp.ne.s32.totalorder %s238, %s240
      %p244 = scmp.eq.s32.totalorder %s31, 0
      %p245 = por %p243, %p244
      %p246 = scmp.ne.s32.totalorder %s238, %s240
      %p247 = scmp.eq.s32.totalorder %s36, 1
      %p248 = por %p246, %p247
      %p249 = scmp.ne.s32.totalorder %s240, %s241
      %p250 = scmp.eq.s32.totalorder %s36, 0
      %p251 = por %p249, %p250
      %p252 = scmp.ne.s32.totalorder %s240, %s241
      %p253 = scmp.eq.s32.totalorder %s37, 1
      %p254 = por %p252, %p253
      %p256 = scmp.ne.s32.totalorder %s241, %s255
      %p257 = scmp.eq.s32.totalorder %s37, 0
      %p258 = por %p256, %p257
      %s260 = sadd.s32 %s259, 1
      %p263 = scmp.eq.s32.totalorder %s31, 1
      %p264 = scmp.ne.s32.totalorder %s259, %s261
      %p265 = scmp.eq.s32.totalorder %s31, 0
      %p266 = por %p264, %p265
      %p267 = scmp.ne.s32.totalorder %s259, %s261
      %p268 = scmp.eq.s32.totalorder %s36, 1
      %p269 = por %p267, %p268
      %p270 = scmp.ne.s32.totalorder %s261, %s262
      %p271 = scmp.eq.s32.totalorder %s36, 0
      %p272 = por %p270, %p271
      %p273 = scmp.ne.s32.totalorder %s261, %s262
      %p274 = scmp.eq.s32.totalorder %s37, 1
      %p275 = por %p273, %p274
      %p277 = scmp.ne.s32.totalorder %s262, %s276
      %p278 = scmp.eq.s32.totalorder %s37, 0
      %p279 = por %p277, %p278
      %s281 = sadd.s32 %s280, 1
      %p284 = scmp.eq.s32.totalorder %s31, 1
      %p285 = scmp.ne.s32.totalorder %s280, %s282
      %p286 = scmp.eq.s32.totalorder %s31, 0
      %p287 = por %p285, %p286
      %p288 = scmp.ne.s32.totalorder %s280, %s282
      %p289 = scmp.eq.s32.totalorder %s36, 1
      %p290 = por %p288, %p289
      %p291 = scmp.ne.s32.totalorder %s282, %s283
      %p292 = scmp.eq.s32.totalorder %s36, 0
      %p293 = por %p291, %p292
      %p294 = scmp.ne.s32.totalorder %s282, %s283
      %p295 = scmp.eq.s32.totalorder %s37, 1
      %p296 = por %p294, %p295
      %p298 = scmp.ne.s32.totalorder %s283, %s297
      %p299 = scmp.eq.s32.totalorder %s37, 0
      %p300 = por %p298, %p299
      %s302 = sadd.s32 %s301, 1
      %p305 = scmp.eq.s32.totalorder %s31, 1
      %p306 = scmp.ne.s32.totalorder %s301, %s303
      %p307 = scmp.eq.s32.totalorder %s31, 0
      %p308 = por %p306, %p307
      %p309 = scmp.ne.s32.totalorder %s301, %s303
      %p310 = scmp.eq.s32.totalorder %s36, 1
      %p311 = por %p309, %p310
      %p312 = scmp.ne.s32.totalorder %s303, %s304
      %p313 = scmp.eq.s32.totalorder %s36, 0
      %p314 = por %p312, %p313
      %p315 = scmp.ne.s32.totalorder %s303, %s304
      %p316 = scmp.eq.s32.totalorder %s37, 1
      %p317 = por %p315, %p316
      %p319 = scmp.ne.s32.totalorder %s304, %s318
      %p320 = scmp.eq.s32.totalorder %s37, 0
      %p321 = por %p319, %p320
      %s323 = sadd.s32 %s322, 1
      %p326 = scmp.eq.s32.totalorder %s31, 1
      %p327 = scmp.ne.s32.totalorder %s322, %s324
      %p328 = scmp.eq.s32.totalorder %s31, 0
      %p329 = por %p327, %p328
      %p330 = scmp.ne.s32.totalorder %s322, %s324
      %p331 = scmp.eq.s32.totalorder %s36, 1
      %p332 = por %p330, %p331
      %p333 = scmp.ne.s32.totalorder %s324, %s325
      %p334 = scmp.eq.s32.totalorder %s36, 0
      %p335 = por %p333, %p334
      %p336 = scmp.ne.s32.totalorder %s324, %s325
      %p337 = scmp.eq.s32.totalorder %s37, 1
      %p338 = por %p336, %p337
      %p340 = scmp.ne.s32.totalorder %s325, %s339
      %p341 = scmp.eq.s32.totalorder %s37, 0
      %p342 = por %p340, %p341
      %s343 = ssub.s32 %s31, %s38
      %p344 = scmp.eq.s32.totalorder %s343, 0
      %s346 = sadd.s32 %s345, 1
      %s347 = scalar_select %p344, %s345, %s346
      %p350 = pneg %p344
      %p351 = scmp.eq.s32.totalorder %s31, 1
      %p352 = por %p350, %p351
      %p353 = scmp.ne.s32.totalorder %s345, %s348
      %p354 = scmp.eq.s32.totalorder %s31, 0
      %p355 = por %p353, %p354
      %p356 = scmp.ne.s32.totalorder %s345, %s348
      %p357 = scmp.eq.s32.totalorder %s36, 1
      %p358 = por %p356, %p357
      %p359 = scmp.ne.s32.totalorder %s348, %s349
      %p360 = scmp.eq.s32.totalorder %s36, 0
      %p361 = por %p359, %p360
      %p362 = scmp.ne.s32.totalorder %s348, %s349
      %p363 = scmp.eq.s32.totalorder %s37, 1
      %p364 = por %p362, %p363
      %p366 = scmp.ne.s32.totalorder %s349, %s365
      %p367 = scmp.eq.s32.totalorder %s37, 0
      %p368 = por %p366, %p367
      %p369 = scmp.le.s32.totalorder 1, %s31
      %p370 = scmp.lt.s32.totalorder %s31, 3
      %p371 = pnand %p369, %p370
      %p372 = pneg %p371
      // Predicated region
      $region9: #{tpu_custom_call.1} parent=5 // pred_check
        _
      $region10: #{tpu_custom_call.1} parent=5 // pred_check_branch
        %374 = sbr.rel (%p371) target = $region12
      $region11: #{tpu_custom_call.1} parent=5 // pred_region
        %s375 = ssub.s32 %s31, 1
        // Predicated region
        $region13: #{tpu_custom_call.1} parent=11 // pred_check
          %p376 = pneg %p52
        $region14: #{tpu_custom_call.1} parent=11 // pred_check_branch
          %378 = sbr.rel (%p376) target = $region16
        $region15: #{tpu_custom_call.1} parent=11 // pred_region
          _
        $region16: #{tpu_custom_call.1} parent=11 // pred_fallthru
          _
        // Predicated region
        $region17: #{tpu_custom_call.1} parent=11 // pred_check
          %p379 = pneg %p125
        $region18: #{tpu_custom_call.1} parent=11 // pred_check_branch
          %381 = sbr.rel (%p379) target = $region20
        $region19: #{tpu_custom_call.1} parent=11 // pred_region
          _
        $region20: #{tpu_custom_call.1} parent=11 // pred_fallthru
          _
        // Predicated region
        $region21: #{tpu_custom_call.1} parent=11 // pred_check
          %p382 = pneg %p146
        $region22: #{tpu_custom_call.1} parent=11 // pred_check_branch
          %384 = sbr.rel (%p382) target = $region24
        $region23: #{tpu_custom_call.1} parent=11 // pred_region
          _
        $region24: #{tpu_custom_call.1} parent=11 // pred_fallthru
          _
        // Predicated region
        $region25: #{tpu_custom_call.1} parent=11 // pred_check
          %p385 = pneg %p167
        $region26: #{tpu_custom_call.1} parent=11 // pred_check_branch
          %387 = sbr.rel (%p385) target = $region28
        $region27: #{tpu_custom_call.1} parent=11 // pred_region
          _
        $region28: #{tpu_custom_call.1} parent=11 // pred_fallthru
          _
        // Predicated region
        $region29: #{tpu_custom_call.1} parent=11 // pred_check
          %p388 = pneg %p188
        $region30: #{tpu_custom_call.1} parent=11 // pred_check_branch
          %390 = sbr.rel (%p388) target = $region32
        $region31: #{tpu_custom_call.1} parent=11 // pred_region
          _
        $region32: #{tpu_custom_call.1} parent=11 // pred_fallthru
          _
        // Predicated region
        $region33: #{tpu_custom_call.1} parent=11 // pred_check
          %p391 = pneg %p209
        $region34: #{tpu_custom_call.1} parent=11 // pred_check_branch
          %393 = sbr.rel (%p391) target = $region36
        $region35: #{tpu_custom_call.1} parent=11 // pred_region
          _
        $region36: #{tpu_custom_call.1} parent=11 // pred_fallthru
          _
        // Predicated region
        $region37: #{tpu_custom_call.1} parent=11 // pred_check
          %p394 = pneg %p230
        $region38: #{tpu_custom_call.1} parent=11 // pred_check_branch
          %396 = sbr.rel (%p394) target = $region40
        $region39: #{tpu_custom_call.1} parent=11 // pred_region
          _
        $region40: #{tpu_custom_call.1} parent=11 // pred_fallthru
          _
        // Predicated region
        $region41: #{tpu_custom_call.1} parent=11 // pred_check
          %p397 = pneg %p251
        $region42: #{tpu_custom_call.1} parent=11 // pred_check_branch
          %399 = sbr.rel (%p397) target = $region44
        $region43: #{tpu_custom_call.1} parent=11 // pred_region
          _
        $region44: #{tpu_custom_call.1} parent=11 // pred_fallthru
          _
        // Predicated region
        $region45: #{tpu_custom_call.1} parent=11 // pred_check
          %p400 = pneg %p272
        $region46: #{tpu_custom_call.1} parent=11 // pred_check_branch
          %402 = sbr.rel (%p400) target = $region48
        $region47: #{tpu_custom_call.1} parent=11 // pred_region
          _
        $region48: #{tpu_custom_call.1} parent=11 // pred_fallthru
          _
        // Predicated region
        $region49: #{tpu_custom_call.1} parent=11 // pred_check
          %p403 = pneg %p293
        $region50: #{tpu_custom_call.1} parent=11 // pred_check_branch
          %405 = sbr.rel (%p403) target = $region52
        $region51: #{tpu_custom_call.1} parent=11 // pred_region
          _
        $region52: #{tpu_custom_call.1} parent=11 // pred_fallthru
          _
        // Predicated region
        $region53: #{tpu_custom_call.1} parent=11 // pred_check
          %p406 = pneg %p314
        $region54: #{tpu_custom_call.1} parent=11 // pred_check_branch
          %408 = sbr.rel (%p406) target = $region56
        $region55: #{tpu_custom_call.1} parent=11 // pred_region
          _
        $region56: #{tpu_custom_call.1} parent=11 // pred_fallthru
          _
        // Predicated region
        $region57: #{tpu_custom_call.1} parent=11 // pred_check
          %p409 = pneg %p335
        $region58: #{tpu_custom_call.1} parent=11 // pred_check_branch
          %411 = sbr.rel (%p409) target = $region60
        $region59: #{tpu_custom_call.1} parent=11 // pred_region
          _
        $region60: #{tpu_custom_call.1} parent=11 // pred_fallthru
          _
      $region12: #{tpu_custom_call.1} parent=5 // pred_fallthru
        _
      %p412 = scmp.lt.s32.totalorder %s31, 2
      // Predicated region
      $region61: #{tpu_custom_call.1} parent=5 // pred_check
        %p413 = pneg %p412
      $region62: #{tpu_custom_call.1} parent=5 // pred_check_branch
        %415 = sbr.rel (%p413) target = $region64
      $region63: #{tpu_custom_call.1} parent=5 // pred_region
        // Predicated region
        $region65: #{tpu_custom_call.1} parent=63 // pred_check
          %p416 = pneg %p72
        $region66: #{tpu_custom_call.1} parent=63 // pred_check_branch
          %418 = sbr.rel (%p416) target = $region68
        $region67: #{tpu_custom_call.1} parent=63 // pred_region
          %s419 = sand.u32 %s62, 1
          %s420 = scalar_lea.sflag [#allocation4], %s419
          %s421 = sand.u32 %s62, 1
          %s422 = smul.addr %s421, 4
          %s423 = scalar_lea.vmem [#allocation3], %s422
          %s425 = ssub.s32 64, 64
          %426 = vsyncadd %s420, %s425
          %s427 = smul.addr %s31, 64
          %s428 = scalar_lea.hbm %s1, %s427
          %s430 = sshll.u32 %s423, 4
          %s431 = int_to_ptr.vmem [resolvable:$true] %s430
          %433 = dma.hbm_to_vmem [thread:$0]  %s428, 64, %s431, %s420
        $region68: #{tpu_custom_call.1} parent=63 // pred_fallthru
          _
        // Predicated region
        $region69: #{tpu_custom_call.1} parent=63 // pred_check
          %p434 = pneg %p98
        $region70: #{tpu_custom_call.1} parent=63 // pred_check_branch
          %436 = sbr.rel (%p434) target = $region72
        $region71: #{tpu_custom_call.1} parent=63 // pred_region
          %s437 = sand.u32 %s88, 1
          %s438 = scalar_lea.sflag [#allocation7], %s437
          %s439 = sand.u32 %s88, 1
          %s440 = smul.addr %s439, 4
          %s441 = scalar_lea.vmem [#allocation6], %s440
          %s443 = ssub.s32 64, 64
          %444 = vsyncadd %s438, %s443
          %s445 = smul.addr %s31, 64
          %s446 = scalar_lea.hbm %s2, %s445
          %s448 = sshll.u32 %s441, 4
          %s449 = int_to_ptr.vmem [resolvable:$true] %s448
          %451 = dma.hbm_to_vmem [thread:$0]  %s446, 64, %s449, %s438
        $region72: #{tpu_custom_call.1} parent=63 // pred_fallthru
          _
      $region64: #{tpu_custom_call.1} parent=5 // pred_fallthru
        _
      %p452 = scmp.le.s32.totalorder 1, %s31
      %p453 = scmp.lt.s32.totalorder %s31, 3
      %p454 = pnand %p452, %p453
      %p455 = pneg %p454
      // Predicated region
      $region73: #{tpu_custom_call.1} parent=5 // pred_check
        _
      $region74: #{tpu_custom_call.1} parent=5 // pred_check_branch
        %457 = sbr.rel (%p454) target = $region76
      $region75: #{tpu_custom_call.1} parent=5 // pred_region
        %s458 = ssub.s32 %s31, 1
        %s459 = sand.u32 %s65, 1
        %s460 = scalar_lea.sflag [#allocation4], %s459
        %s461 = sand.u32 %s65, 1
        %s462 = smul.addr %s461, 4
        %s463 = scalar_lea.vmem [#allocation3], %s462
        // Predicated region
        $region77: #{tpu_custom_call.1} parent=75 // pred_check
          %p464 = pneg %p78
        $region78: #{tpu_custom_call.1} parent=75 // pred_check_branch
          %466 = sbr.rel (%p464) target = $region80
        $region79: #{tpu_custom_call.1} parent=75 // pred_region
          %467 = dma.done %s460, 64
        $region80: #{tpu_custom_call.1} parent=75 // pred_fallthru
          _
        %s468 = sand.u32 %s91, 1
        %s469 = scalar_lea.sflag [#allocation7], %s468
        %s470 = sand.u32 %s91, 1
        %s471 = smul.addr %s470, 4
        %s472 = scalar_lea.vmem [#allocation6], %s471
        // Predicated region
        $region81: #{tpu_custom_call.1} parent=75 // pred_check
          %p473 = pneg %p104
        $region82: #{tpu_custom_call.1} parent=75 // pred_check_branch
          %475 = sbr.rel (%p473) target = $region84
        $region83: #{tpu_custom_call.1} parent=75 // pred_region
          %476 = dma.done %s469, 64
        $region84: #{tpu_custom_call.1} parent=75 // pred_fallthru
          _
        %p477 = pneg %p52
        %p478 = pneg %p49
        %s479 = sand.u32 %s65, 1
        %s480 = scalar_lea.sflag [#allocation4], %s479
        %s481 = sand.u32 %s65, 1
        %s482 = smul.addr %s481, 4
        %s483 = scalar_lea.vmem [#allocation3], %s482
        %p484 = pneg %p78
        %p485 = pneg %p75
        %s486 = sand.u32 %s91, 1
        %s487 = scalar_lea.sflag [#allocation7], %s486
        %s488 = sand.u32 %s91, 1
        %s489 = smul.addr %s488, 4
        %s490 = scalar_lea.vmem [#allocation6], %s489
        %p491 = pneg %p104
        %p492 = pneg %p101
        %p493 = pneg %p125
        %p494 = pneg %p122
        %p495 = pneg %p146
        %p496 = pneg %p143
        %p497 = pneg %p167
        %p498 = pneg %p164
        %p499 = pneg %p188
        %p500 = pneg %p185
        %p501 = pneg %p209
        %p502 = pneg %p206
        %p503 = pneg %p230
        %p504 = pneg %p227
        %p505 = pneg %p251
        %p506 = pneg %p248
        %p507 = pneg %p272
        %p508 = pneg %p269
        %p509 = pneg %p293
        %p510 = pneg %p290
        %p511 = pneg %p314
        %p512 = pneg %p311
        %p513 = pneg %p335
        %p514 = pneg %p332
        %p515 = pneg %p361
        %p516 = pneg %p358
        %s517 = sand.u32 %s348, 1
        %s518 = scalar_lea.sflag [#allocation5], %s517
        %s519 = sand.u32 %s348, 1
        %s520 = smul.addr %s519, 4
        %s521 = scalar_lea.vmem [#allocation8], %s520
        %v522 = vld [vmem:[%s0] sm:$0xff]
        %v523 = vld [vmem:[%s463] sm:$0x7]
        %v524 = vld [vmem:[%s472] sm:$0x7]
        %526 = vset.pattern.permute.xlu0 0
        %527 = vperm.xlu0 %526, %v522
        %v528 = vpop.permute.xlu0 %527
        %v530 = vlaneseq
        %v531 = vshrl.u32 %v530, 7
        %v532 = vsub.s32 0, %v531
        %v533 = vrot.slane %v523, %v532
        %v534 = vmul.f32 %v528, %v533
        %v535 = vlaneseq
        %v536 = vshrl.u32 %v535, 7
        %v537 = vsub.s32 1, %v536
        %v538 = vrot.slane %v523, %v537
        %v539 = vmul.f32 %v528, %v538
        %v540 = vlaneseq
        %v541 = vshrl.u32 %v540, 7
        %v542 = vsub.s32 2, %v541
        %v543 = vrot.slane %v523, %v542
        %v544 = vmul.f32 %v528, %v543
        %v545 = vand.u32 2147483647, %v534
        %vm546 = vcmp.le.f32.partialorder %v545, 0.7853982
        %vm547 = vcmp.lt.s32.totalorder %v534, 0
        %v548 = vand.u32 %v534, 2139095040
        %v549 = vshrl.u32 %v548, 23
        %v550 = vsub.s32 %v549, 127
        %v551 = vand.u32 2147483647, %v534
        %v552 = vand.u32 %v551, 8388607
        %v553 = vor.u32 %v552, 8388608
        %v554 = vsub.s32 0, %v553
        %v555 = vadd.s32 %v550, 1
        %vm556 = vcmp.gt.s32.totalorder %v555, 0
        %v557 = vsel %vm556, %v555, 0
        %v558 = vshrl.u32 %v557, 5
        %v559 = vand.u32 %v557, 31
        %v560 = vsub.s32 32, %v559
        %v561 = vshrl.u32 683565275, %v560
        %v562 = vshll.u32 683565275, %v559
        %v563 = vshrl.u32 2475754826, %v560
        %v564 = vor.u32 %v562, %v563
        %v565 = vshll.u32 2475754826, %v559
        %v566 = vshrl.u32 2131351028, %v560
        %v567 = vor.u32 %v565, %v566
        %v568 = vshll.u32 2131351028, %v559
        %v569 = vshrl.u32 2102212464, %v560
        %v570 = vor.u32 %v568, %v569
        %v571 = vshll.u32 2102212464, %v559
        %v572 = vshrl.u32 920167782, %v560
        %v573 = vor.u32 %v571, %v572
        %v574 = vshll.u32 920167782, %v559
        %v575 = vshrl.u32 1326507024, %v560
        %v576 = vor.u32 %v574, %v575
        %vm577 = vcmp.lt.s32.totalorder %v558, 1
        %vm578 = vcmp.lt.s32.totalorder %v558, 2
        %vm579 = vcmp.lt.s32.totalorder %v558, 3
        %vm580 = vcmp.lt.s32.totalorder %v558, 4
        %v581 = vsel %vm577, %v561, %v564
        %v582 = vsel %vm580, %v570, 2102212464
        %v583 = vsel %vm579, %v567, %v582
        %v584 = vsel %vm578, %v581, %v583
        %v585 = vsel %vm577, %v564, %v567
        %v586 = vsel %vm580, %v573, 920167782
        %v587 = vsel %vm579, %v570, %v586
        %v588 = vsel %vm578, %v585, %v587
        %v589 = vsel %vm577, %v567, %v570
        %v590 = vsel %vm580, %v576, 1326507024
        %v591 = vsel %vm579, %v573, %v590
        %v592 = vsel %vm578, %v589, %v591
        %v593 = vshll.u32 %v553, 8
        %v594 = vmul.u32.u64.compose %v593, %v592
        %v595 = vextract.low.u32 %v594
        %v596 = vextract.high.u32 %v594
        %v597 = vmul.u32.u64.compose %v593, %v588
        %v598 = vextract.low.u32 %v597
        %v599 = vextract.high.u32 %v597
        %v600 = vmul.u32 %v593, %v584
        %v601 = vadd.s32 %v596, %v598
        %vm602 = vc.u32 %v596, %v598
        %v603 = vadd.s32 %v599, 1
        %v604 = vsel %vm602, %v603, %v599
        %v605 = vadd.s32 %v600, %v604
        %v606 = vadd.s32 %v605, 536870912
        %v607 = vshrl.u32 %v606, 30
        %v608 = vshll.u32 %v607, 30
        %v609 = vsub.s32 %v605, %v608
        %vm610 = vcmp.lt.s32.totalorder %v609, 0
        %v611 = vsub.s32 0, %v609
        %v612 = vsel %vm610, %v611, %v609
        %v613 = vclz %v612
        %v614 = vsub.s32 %v613, 2
        %vm615 = vcmp.gt.s32.totalorder 0, %v614
        %v616 = vsel %vm615, 0, %v614
        %v617 = vsub.s32 32, %v616
        %v618 = vshll.u32 %v609, %v616
        %v619 = vshrl.u32 %v601, %v617
        %v620 = vor.u32 %v618, %v619
        %v621 = vsub.s32 4294967266, %v616
        %v622 = vadd.s32 %v621, 127
        %v623 = vshll.u32 %v622, 23
        %v624 = vor.u32 4788187, %v623
        %v625 = vand.u32 2147483647, %v624
        %v627 = vcvt.s32.f32 %v620
        %v628 = vmul.f32 %v627, %v625
        %v629 = vxor.u32 %v628, 2147483648
        %v630 = vsel %vm547, %v629, %v628
        %v631 = vsub.s32 4, %v607
        %v632 = vsel %vm547, %v631, %v607
        %v633 = vsel %vm546, %v534, %v630
        %v634 = vsel %vm546, 0, %v632
        %v635 = vcosq.f32.pop %v633
        %v636 = vsinq.f32.pop %v633
        %vm637 = vweird.f32 %v534
        %v638 = vadd.s32 %v634, 3
        %v639 = vand.u32 %v638, 3
        %vm640 = vcmp.lt.s32.totalorder %v639, 2
        %vm641 = vcmp.eq.s32.totalorder %v639, 0
        %v642 = vxor.u32 %v636, 2147483648
        %v643 = vsel %vm641, %v635, %v642
        %vm644 = vcmp.eq.s32.totalorder %v639, 2
        %v645 = vxor.u32 %v635, 2147483648
        %v646 = vsel %vm644, %v645, %v636
        %v647 = vsel %vm640, %v643, %v646
        %v648 = vsel %vm637, nan, %v647
        %v649 = vand.u32 2147483647, %v539
        %vm650 = vcmp.le.f32.partialorder %v649, 0.7853982
        %vm651 = vcmp.lt.s32.totalorder %v539, 0
        %v652 = vand.u32 %v539, 2139095040
        %v653 = vshrl.u32 %v652, 23
        %v654 = vsub.s32 %v653, 127
        %v655 = vand.u32 2147483647, %v539
        %v656 = vand.u32 %v655, 8388607
        %v657 = vor.u32 %v656, 8388608
        %v658 = vsub.s32 0, %v657
        %v659 = vadd.s32 %v654, 1
        %vm660 = vcmp.gt.s32.totalorder %v659, 0
        %v661 = vsel %vm660, %v659, 0
        %v662 = vshrl.u32 %v661, 5
        %v663 = vand.u32 %v661, 31
        %v664 = vsub.s32 32, %v663
        %v665 = vshrl.u32 683565275, %v664
        %v666 = vshll.u32 683565275, %v663
        %v667 = vshrl.u32 2475754826, %v664
        %v668 = vor.u32 %v666, %v667
        %v669 = vshll.u32 2475754826, %v663
        %v670 = vshrl.u32 2131351028, %v664
        %v671 = vor.u32 %v669, %v670
        %v672 = vshll.u32 2131351028, %v663
        %v673 = vshrl.u32 2102212464, %v664
        %v674 = vor.u32 %v672, %v673
        %v675 = vshll.u32 2102212464, %v663
        %v676 = vshrl.u32 920167782, %v664
        %v677 = vor.u32 %v675, %v676
        %v678 = vshll.u32 920167782, %v663
        %v679 = vshrl.u32 1326507024, %v664
        %v680 = vor.u32 %v678, %v679
        %vm681 = vcmp.lt.s32.totalorder %v662, 1
        %vm682 = vcmp.lt.s32.totalorder %v662, 2
        %vm683 = vcmp.lt.s32.totalorder %v662, 3
        %vm684 = vcmp.lt.s32.totalorder %v662, 4
        %v685 = vsel %vm681, %v665, %v668
        %v686 = vsel %vm684, %v674, 2102212464
        %v687 = vsel %vm683, %v671, %v686
        %v688 = vsel %vm682, %v685, %v687
        %v689 = vsel %vm681, %v668, %v671
        %v690 = vsel %vm684, %v677, 920167782
        %v691 = vsel %vm683, %v674, %v690
        %v692 = vsel %vm682, %v689, %v691
        %v693 = vsel %vm681, %v671, %v674
        %v694 = vsel %vm684, %v680, 1326507024
        %v695 = vsel %vm683, %v677, %v694
        %v696 = vsel %vm682, %v693, %v695
        %v697 = vshll.u32 %v657, 8
        %v698 = vmul.u32.u64.compose %v697, %v696
        %v699 = vextract.low.u32 %v698
        %v700 = vextract.high.u32 %v698
        %v701 = vmul.u32.u64.compose %v697, %v692
        %v702 = vextract.low.u32 %v701
        %v703 = vextract.high.u32 %v701
        %v704 = vmul.u32 %v697, %v688
        %v705 = vadd.s32 %v700, %v702
        %vm706 = vc.u32 %v700, %v702
        %v707 = vadd.s32 %v703, 1
        %v708 = vsel %vm706, %v707, %v703
        %v709 = vadd.s32 %v704, %v708
        %v710 = vadd.s32 %v709, 536870912
        %v711 = vshrl.u32 %v710, 30
        %v712 = vshll.u32 %v711, 30
        %v713 = vsub.s32 %v709, %v712
        %vm714 = vcmp.lt.s32.totalorder %v713, 0
        %v715 = vsub.s32 0, %v713
        %v716 = vsel %vm714, %v715, %v713
        %v717 = vclz %v716
        %v718 = vsub.s32 %v717, 2
        %vm719 = vcmp.gt.s32.totalorder 0, %v718
        %v720 = vsel %vm719, 0, %v718
        %v721 = vsub.s32 32, %v720
        %v722 = vshll.u32 %v713, %v720
        %v723 = vshrl.u32 %v705, %v721
        %v724 = vor.u32 %v722, %v723
        %v725 = vsub.s32 4294967266, %v720
        %v726 = vadd.s32 %v725, 127
        %v727 = vshll.u32 %v726, 23
        %v728 = vor.u32 4788187, %v727
        %v729 = vand.u32 2147483647, %v728
        %v731 = vcvt.s32.f32 %v724
        %v732 = vmul.f32 %v731, %v729
        %v733 = vxor.u32 %v732, 2147483648
        %v734 = vsel %vm651, %v733, %v732
        %v735 = vsub.s32 4, %v711
        %v736 = vsel %vm651, %v735, %v711
        %v737 = vsel %vm650, %v539, %v734
        %v738 = vsel %vm650, 0, %v736
        %v739 = vcosq.f32.pop %v737
        %v740 = vsinq.f32.pop %v737
        %vm741 = vweird.f32 %v539
        %v742 = vadd.s32 %v738, 3
        %v743 = vand.u32 %v742, 3
        %vm744 = vcmp.lt.s32.totalorder %v743, 2
        %vm745 = vcmp.eq.s32.totalorder %v743, 0
        %v746 = vxor.u32 %v740, 2147483648
        %v747 = vsel %vm745, %v739, %v746
        %vm748 = vcmp.eq.s32.totalorder %v743, 2
        %v749 = vxor.u32 %v739, 2147483648
        %v750 = vsel %vm748, %v749, %v740
        %v751 = vsel %vm744, %v747, %v750
        %v752 = vsel %vm741, nan, %v751
        %v753 = vand.u32 2147483647, %v544
        %vm754 = vcmp.le.f32.partialorder %v753, 0.7853982
        %vm755 = vcmp.lt.s32.totalorder %v544, 0
        %v756 = vand.u32 %v544, 2139095040
        %v757 = vshrl.u32 %v756, 23
        %v758 = vsub.s32 %v757, 127
        %v759 = vand.u32 2147483647, %v544
        %v760 = vand.u32 %v759, 8388607
        %v761 = vor.u32 %v760, 8388608
        %v762 = vsub.s32 0, %v761
        %v763 = vadd.s32 %v758, 1
        %vm764 = vcmp.gt.s32.totalorder %v763, 0
        %v765 = vsel %vm764, %v763, 0
        %v766 = vshrl.u32 %v765, 5
        %v767 = vand.u32 %v765, 31
        %v768 = vsub.s32 32, %v767
        %v769 = vshrl.u32 683565275, %v768
        %v770 = vshll.u32 683565275, %v767
        %v771 = vshrl.u32 2475754826, %v768
        %v772 = vor.u32 %v770, %v771
        %v773 = vshll.u32 2475754826, %v767
        %v774 = vshrl.u32 2131351028, %v768
        %v775 = vor.u32 %v773, %v774
        %v776 = vshll.u32 2131351028, %v767
        %v777 = vshrl.u32 2102212464, %v768
        %v778 = vor.u32 %v776, %v777
        %v779 = vshll.u32 2102212464, %v767
        %v780 = vshrl.u32 920167782, %v768
        %v781 = vor.u32 %v779, %v780
        %v782 = vshll.u32 920167782, %v767
        %v783 = vshrl.u32 1326507024, %v768
        %v784 = vor.u32 %v782, %v783
        %vm785 = vcmp.lt.s32.totalorder %v766, 1
        %vm786 = vcmp.lt.s32.totalorder %v766, 2
        %vm787 = vcmp.lt.s32.totalorder %v766, 3
        %vm788 = vcmp.lt.s32.totalorder %v766, 4
        %v789 = vsel %vm785, %v769, %v772
        %v790 = vsel %vm788, %v778, 2102212464
        %v791 = vsel %vm787, %v775, %v790
        %v792 = vsel %vm786, %v789, %v791
        %v793 = vsel %vm785, %v772, %v775
        %v794 = vsel %vm788, %v781, 920167782
        %v795 = vsel %vm787, %v778, %v794
        %v796 = vsel %vm786, %v793, %v795
        %v797 = vsel %vm785, %v775, %v778
        %v798 = vsel %vm788, %v784, 1326507024
        %v799 = vsel %vm787, %v781, %v798
        %v800 = vsel %vm786, %v797, %v799
        %v801 = vshll.u32 %v761, 8
        %v802 = vmul.u32.u64.compose %v801, %v800
        %v803 = vextract.low.u32 %v802
        %v804 = vextract.high.u32 %v802
        %v805 = vmul.u32.u64.compose %v801, %v796
        %v806 = vextract.low.u32 %v805
        %v807 = vextract.high.u32 %v805
        %v808 = vmul.u32 %v801, %v792
        %v809 = vadd.s32 %v804, %v806
        %vm810 = vc.u32 %v804, %v806
        %v811 = vadd.s32 %v807, 1
        %v812 = vsel %vm810, %v811, %v807
        %v813 = vadd.s32 %v808, %v812
        %v814 = vadd.s32 %v813, 536870912
        %v815 = vshrl.u32 %v814, 30
        %v816 = vshll.u32 %v815, 30
        %v817 = vsub.s32 %v813, %v816
        %vm818 = vcmp.lt.s32.totalorder %v817, 0
        %v819 = vsub.s32 0, %v817
        %v820 = vsel %vm818, %v819, %v817
        %v821 = vclz %v820
        %v822 = vsub.s32 %v821, 2
        %vm823 = vcmp.gt.s32.totalorder 0, %v822
        %v824 = vsel %vm823, 0, %v822
        %v825 = vsub.s32 32, %v824
        %v826 = vshll.u32 %v817, %v824
        %v827 = vshrl.u32 %v809, %v825
        %v828 = vor.u32 %v826, %v827
        %v829 = vsub.s32 4294967266, %v824
        %v830 = vadd.s32 %v829, 127
        %v831 = vshll.u32 %v830, 23
        %v832 = vor.u32 4788187, %v831
        %v833 = vand.u32 2147483647, %v832
        %v835 = vcvt.s32.f32 %v828
        %v836 = vmul.f32 %v835, %v833
        %v837 = vxor.u32 %v836, 2147483648
        %v838 = vsel %vm755, %v837, %v836
        %v839 = vsub.s32 4, %v815
        %v840 = vsel %vm755, %v839, %v815
        %v841 = vsel %vm754, %v544, %v838
        %v842 = vsel %vm754, 0, %v840
        %v843 = vcosq.f32.pop %v841
        %v844 = vsinq.f32.pop %v841
        %vm845 = vweird.f32 %v544
        %v846 = vadd.s32 %v842, 3
        %v847 = vand.u32 %v846, 3
        %vm848 = vcmp.lt.s32.totalorder %v847, 2
        %vm849 = vcmp.eq.s32.totalorder %v847, 0
        %v850 = vxor.u32 %v844, 2147483648
        %v851 = vsel %vm849, %v843, %v850
        %vm852 = vcmp.eq.s32.totalorder %v847, 2
        %v853 = vxor.u32 %v843, 2147483648
        %v854 = vsel %vm852, %v853, %v844
        %v855 = vsel %vm848, %v851, %v854
        %v856 = vsel %vm845, nan, %v855
        %v857 = vand.u32 2147483647, %v534
        %vm858 = vcmp.le.f32.partialorder %v857, 0.7853982
        %vm859 = vcmp.lt.s32.totalorder %v534, 0
        %v860 = vand.u32 %v534, 2139095040
        %v861 = vshrl.u32 %v860, 23
        %v862 = vsub.s32 %v861, 127
        %v863 = vand.u32 2147483647, %v534
        %v864 = vand.u32 %v863, 8388607
        %v865 = vor.u32 %v864, 8388608
        %v866 = vsub.s32 0, %v865
        %v867 = vadd.s32 %v862, 1
        %vm868 = vcmp.gt.s32.totalorder %v867, 0
        %v869 = vsel %vm868, %v867, 0
        %v870 = vshrl.u32 %v869, 5
        %v871 = vand.u32 %v869, 31
        %v872 = vsub.s32 32, %v871
        %v873 = vshrl.u32 683565275, %v872
        %v874 = vshll.u32 683565275, %v871
        %v875 = vshrl.u32 2475754826, %v872
        %v876 = vor.u32 %v874, %v875
        %v877 = vshll.u32 2475754826, %v871
        %v878 = vshrl.u32 2131351028, %v872
        %v879 = vor.u32 %v877, %v878
        %v880 = vshll.u32 2131351028, %v871
        %v881 = vshrl.u32 2102212464, %v872
        %v882 = vor.u32 %v880, %v881
        %v883 = vshll.u32 2102212464, %v871
        %v884 = vshrl.u32 920167782, %v872
        %v885 = vor.u32 %v883, %v884
        %v886 = vshll.u32 920167782, %v871
        %v887 = vshrl.u32 1326507024, %v872
        %v888 = vor.u32 %v886, %v887
        %vm889 = vcmp.lt.s32.totalorder %v870, 1
        %vm890 = vcmp.lt.s32.totalorder %v870, 2
        %vm891 = vcmp.lt.s32.totalorder %v870, 3
        %vm892 = vcmp.lt.s32.totalorder %v870, 4
        %v893 = vsel %vm889, %v873, %v876
        %v894 = vsel %vm892, %v882, 2102212464
        %v895 = vsel %vm891, %v879, %v894
        %v896 = vsel %vm890, %v893, %v895
        %v897 = vsel %vm889, %v876, %v879
        %v898 = vsel %vm892, %v885, 920167782
        %v899 = vsel %vm891, %v882, %v898
        %v900 = vsel %vm890, %v897, %v899
        %v901 = vsel %vm889, %v879, %v882
        %v902 = vsel %vm892, %v888, 1326507024
        %v903 = vsel %vm891, %v885, %v902
        %v904 = vsel %vm890, %v901, %v903
        %v905 = vshll.u32 %v865, 8
        %v906 = vmul.u32.u64.compose %v905, %v904
        %v907 = vextract.low.u32 %v906
        %v908 = vextract.high.u32 %v906
        %v909 = vmul.u32.u64.compose %v905, %v900
        %v910 = vextract.low.u32 %v909
        %v911 = vextract.high.u32 %v909
        %v912 = vmul.u32 %v905, %v896
        %v913 = vadd.s32 %v908, %v910
        %vm914 = vc.u32 %v908, %v910
        %v915 = vadd.s32 %v911, 1
        %v916 = vsel %vm914, %v915, %v911
        %v917 = vadd.s32 %v912, %v916
        %v918 = vadd.s32 %v917, 536870912
        %v919 = vshrl.u32 %v918, 30
        %v920 = vshll.u32 %v919, 30
        %v921 = vsub.s32 %v917, %v920
        %vm922 = vcmp.lt.s32.totalorder %v921, 0
        %v923 = vsub.s32 0, %v921
        %v924 = vsel %vm922, %v923, %v921
        %v925 = vclz %v924
        %v926 = vsub.s32 %v925, 2
        %vm927 = vcmp.gt.s32.totalorder 0, %v926
        %v928 = vsel %vm927, 0, %v926
        %v929 = vsub.s32 32, %v928
        %v930 = vshll.u32 %v921, %v928
        %v931 = vshrl.u32 %v913, %v929
        %v932 = vor.u32 %v930, %v931
        %v933 = vsub.s32 4294967266, %v928
        %v934 = vadd.s32 %v933, 127
        %v935 = vshll.u32 %v934, 23
        %v936 = vor.u32 4788187, %v935
        %v937 = vand.u32 2147483647, %v936
        %v939 = vcvt.s32.f32 %v932
        %v940 = vmul.f32 %v939, %v937
        %v941 = vxor.u32 %v940, 2147483648
        %v942 = vsel %vm859, %v941, %v940
        %v943 = vsub.s32 4, %v919
        %v944 = vsel %vm859, %v943, %v919
        %v945 = vsel %vm858, %v534, %v942
        %v946 = vsel %vm858, 0, %v944
        %v947 = vcosq.f32.pop %v945
        %v948 = vsinq.f32.pop %v945
        %vm949 = vweird.f32 %v534
        %v950 = vand.u32 %v946, 3
        %vm951 = vcmp.lt.s32.totalorder %v950, 2
        %vm952 = vcmp.eq.s32.totalorder %v950, 0
        %v953 = vxor.u32 %v948, 2147483648
        %v954 = vsel %vm952, %v947, %v953
        %vm955 = vcmp.eq.s32.totalorder %v950, 2
        %v956 = vxor.u32 %v947, 2147483648
        %v957 = vsel %vm955, %v956, %v948
        %v958 = vsel %vm951, %v954, %v957
        %v959 = vsel %vm949, nan, %v958
        %v960 = vand.u32 2147483647, %v539
        %vm961 = vcmp.le.f32.partialorder %v960, 0.7853982
        %vm962 = vcmp.lt.s32.totalorder %v539, 0
        %v963 = vand.u32 %v539, 2139095040
        %v964 = vshrl.u32 %v963, 23
        %v965 = vsub.s32 %v964, 127
        %v966 = vand.u32 2147483647, %v539
        %v967 = vand.u32 %v966, 8388607
        %v968 = vor.u32 %v967, 8388608
        %v969 = vsub.s32 0, %v968
        %v970 = vadd.s32 %v965, 1
        %vm971 = vcmp.gt.s32.totalorder %v970, 0
        %v972 = vsel %vm971, %v970, 0
        %v973 = vshrl.u32 %v972, 5
        %v974 = vand.u32 %v972, 31
        %v975 = vsub.s32 32, %v974
        %v976 = vshrl.u32 683565275, %v975
        %v977 = vshll.u32 683565275, %v974
        %v978 = vshrl.u32 2475754826, %v975
        %v979 = vor.u32 %v977, %v978
        %v980 = vshll.u32 2475754826, %v974
        %v981 = vshrl.u32 2131351028, %v975
        %v982 = vor.u32 %v980, %v981
        %v983 = vshll.u32 2131351028, %v974
        %v984 = vshrl.u32 2102212464, %v975
        %v985 = vor.u32 %v983, %v984
        %v986 = vshll.u32 2102212464, %v974
        %v987 = vshrl.u32 920167782, %v975
        %v988 = vor.u32 %v986, %v987
        %v989 = vshll.u32 920167782, %v974
        %v990 = vshrl.u32 1326507024, %v975
        %v991 = vor.u32 %v989, %v990
        %vm992 = vcmp.lt.s32.totalorder %v973, 1
        %vm993 = vcmp.lt.s32.totalorder %v973, 2
        %vm994 = vcmp.lt.s32.totalorder %v973, 3
        %vm995 = vcmp.lt.s32.totalorder %v973, 4
        %v996 = vsel %vm992, %v976, %v979
        %v997 = vsel %vm995, %v985, 2102212464
        %v998 = vsel %vm994, %v982, %v997
        %v999 = vsel %vm993, %v996, %v998
        %v1000 = vsel %vm992, %v979, %v982
        %v1001 = vsel %vm995, %v988, 920167782
        %v1002 = vsel %vm994, %v985, %v1001
        %v1003 = vsel %vm993, %v1000, %v1002
        %v1004 = vsel %vm992, %v982, %v985
        %v1005 = vsel %vm995, %v991, 1326507024
        %v1006 = vsel %vm994, %v988, %v1005
        %v1007 = vsel %vm993, %v1004, %v1006
        %v1008 = vshll.u32 %v968, 8
        %v1009 = vmul.u32.u64.compose %v1008, %v1007
        %v1010 = vextract.low.u32 %v1009
        %v1011 = vextract.high.u32 %v1009
        %v1012 = vmul.u32.u64.compose %v1008, %v1003
        %v1013 = vextract.low.u32 %v1012
        %v1014 = vextract.high.u32 %v1012
        %v1015 = vmul.u32 %v1008, %v999
        %v1016 = vadd.s32 %v1011, %v1013
        %vm1017 = vc.u32 %v1011, %v1013
        %v1018 = vadd.s32 %v1014, 1
        %v1019 = vsel %vm1017, %v1018, %v1014
        %v1020 = vadd.s32 %v1015, %v1019
        %v1021 = vadd.s32 %v1020, 536870912
        %v1022 = vshrl.u32 %v1021, 30
        %v1023 = vshll.u32 %v1022, 30
        %v1024 = vsub.s32 %v1020, %v1023
        %vm1025 = vcmp.lt.s32.totalorder %v1024, 0
        %v1026 = vsub.s32 0, %v1024
        %v1027 = vsel %vm1025, %v1026, %v1024
        %v1028 = vclz %v1027
        %v1029 = vsub.s32 %v1028, 2
        %vm1030 = vcmp.gt.s32.totalorder 0, %v1029
        %v1031 = vsel %vm1030, 0, %v1029
        %v1032 = vsub.s32 32, %v1031
        %v1033 = vshll.u32 %v1024, %v1031
        %v1034 = vshrl.u32 %v1016, %v1032
        %v1035 = vor.u32 %v1033, %v1034
        %v1036 = vsub.s32 4294967266, %v1031
        %v1037 = vadd.s32 %v1036, 127
        %v1038 = vshll.u32 %v1037, 23
        %v1039 = vor.u32 4788187, %v1038
        %v1040 = vand.u32 2147483647, %v1039
        %v1042 = vcvt.s32.f32 %v1035
        %v1043 = vmul.f32 %v1042, %v1040
        %v1044 = vxor.u32 %v1043, 2147483648
        %v1045 = vsel %vm962, %v1044, %v1043
        %v1046 = vsub.s32 4, %v1022
        %v1047 = vsel %vm962, %v1046, %v1022
        %v1048 = vsel %vm961, %v539, %v1045
        %v1049 = vsel %vm961, 0, %v1047
        %v1050 = vcosq.f32.pop %v1048
        %v1051 = vsinq.f32.pop %v1048
        %vm1052 = vweird.f32 %v539
        %v1053 = vand.u32 %v1049, 3
        %vm1054 = vcmp.lt.s32.totalorder %v1053, 2
        %vm1055 = vcmp.eq.s32.totalorder %v1053, 0
        %v1056 = vxor.u32 %v1051, 2147483648
        %v1057 = vsel %vm1055, %v1050, %v1056
        %vm1058 = vcmp.eq.s32.totalorder %v1053, 2
        %v1059 = vxor.u32 %v1050, 2147483648
        %v1060 = vsel %vm1058, %v1059, %v1051
        %v1061 = vsel %vm1054, %v1057, %v1060
        %v1062 = vsel %vm1052, nan, %v1061
        %v1063 = vand.u32 2147483647, %v544
        %vm1064 = vcmp.le.f32.partialorder %v1063, 0.7853982
        %vm1065 = vcmp.lt.s32.totalorder %v544, 0
        %v1066 = vand.u32 %v544, 2139095040
        %v1067 = vshrl.u32 %v1066, 23
        %v1068 = vsub.s32 %v1067, 127
        %v1069 = vand.u32 2147483647, %v544
        %v1070 = vand.u32 %v1069, 8388607
        %v1071 = vor.u32 %v1070, 8388608
        %v1072 = vsub.s32 0, %v1071
        %v1073 = vadd.s32 %v1068, 1
        %vm1074 = vcmp.gt.s32.totalorder %v1073, 0
        %v1075 = vsel %vm1074, %v1073, 0
        %v1076 = vshrl.u32 %v1075, 5
        %v1077 = vand.u32 %v1075, 31
        %v1078 = vsub.s32 32, %v1077
        %v1079 = vshrl.u32 683565275, %v1078
        %v1080 = vshll.u32 683565275, %v1077
        %v1081 = vshrl.u32 2475754826, %v1078
        %v1082 = vor.u32 %v1080, %v1081
        %v1083 = vshll.u32 2475754826, %v1077
        %v1084 = vshrl.u32 2131351028, %v1078
        %v1085 = vor.u32 %v1083, %v1084
        %v1086 = vshll.u32 2131351028, %v1077
        %v1087 = vshrl.u32 2102212464, %v1078
        %v1088 = vor.u32 %v1086, %v1087
        %v1089 = vshll.u32 2102212464, %v1077
        %v1090 = vshrl.u32 920167782, %v1078
        %v1091 = vor.u32 %v1089, %v1090
        %v1092 = vshll.u32 920167782, %v1077
        %v1093 = vshrl.u32 1326507024, %v1078
        %v1094 = vor.u32 %v1092, %v1093
        %vm1095 = vcmp.lt.s32.totalorder %v1076, 1
        %vm1096 = vcmp.lt.s32.totalorder %v1076, 2
        %vm1097 = vcmp.lt.s32.totalorder %v1076, 3
        %vm1098 = vcmp.lt.s32.totalorder %v1076, 4
        %v1099 = vsel %vm1095, %v1079, %v1082
        %v1100 = vsel %vm1098, %v1088, 2102212464
        %v1101 = vsel %vm1097, %v1085, %v1100
        %v1102 = vsel %vm1096, %v1099, %v1101
        %v1103 = vsel %vm1095, %v1082, %v1085
        %v1104 = vsel %vm1098, %v1091, 920167782
        %v1105 = vsel %vm1097, %v1088, %v1104
        %v1106 = vsel %vm1096, %v1103, %v1105
        %v1107 = vsel %vm1095, %v1085, %v1088
        %v1108 = vsel %vm1098, %v1094, 1326507024
        %v1109 = vsel %vm1097, %v1091, %v1108
        %v1110 = vsel %vm1096, %v1107, %v1109
        %v1111 = vshll.u32 %v1071, 8
        %v1112 = vmul.u32.u64.compose %v1111, %v1110
        %v1113 = vextract.low.u32 %v1112
        %v1114 = vextract.high.u32 %v1112
        %v1115 = vmul.u32.u64.compose %v1111, %v1106
        %v1116 = vextract.low.u32 %v1115
        %v1117 = vextract.high.u32 %v1115
        %v1118 = vmul.u32 %v1111, %v1102
        %v1119 = vadd.s32 %v1114, %v1116
        %vm1120 = vc.u32 %v1114, %v1116
        %v1121 = vadd.s32 %v1117, 1
        %v1122 = vsel %vm1120, %v1121, %v1117
        %v1123 = vadd.s32 %v1118, %v1122
        %v1124 = vadd.s32 %v1123, 536870912
        %v1125 = vshrl.u32 %v1124, 30
        %v1126 = vshll.u32 %v1125, 30
        %v1127 = vsub.s32 %v1123, %v1126
        %vm1128 = vcmp.lt.s32.totalorder %v1127, 0
        %v1129 = vsub.s32 0, %v1127
        %v1130 = vsel %vm1128, %v1129, %v1127
        %v1131 = vclz %v1130
        %v1132 = vsub.s32 %v1131, 2
        %vm1133 = vcmp.gt.s32.totalorder 0, %v1132
        %v1134 = vsel %vm1133, 0, %v1132
        %v1135 = vsub.s32 32, %v1134
        %v1136 = vshll.u32 %v1127, %v1134
        %v1137 = vshrl.u32 %v1119, %v1135
        %v1138 = vor.u32 %v1136, %v1137
        %v1139 = vsub.s32 4294967266, %v1134
        %v1140 = vadd.s32 %v1139, 127
        %v1141 = vshll.u32 %v1140, 23
        %v1142 = vor.u32 4788187, %v1141
        %v1143 = vand.u32 2147483647, %v1142
        %v1145 = vcvt.s32.f32 %v1138
        %v1146 = vmul.f32 %v1145, %v1143
        %v1147 = vxor.u32 %v1146, 2147483648
        %v1148 = vsel %vm1065, %v1147, %v1146
        %v1149 = vsub.s32 4, %v1125
        %v1150 = vsel %vm1065, %v1149, %v1125
        %v1151 = vsel %vm1064, %v544, %v1148
        %v1152 = vsel %vm1064, 0, %v1150
        %v1153 = vcosq.f32.pop %v1151
        %v1154 = vsinq.f32.pop %v1151
        %vm1155 = vweird.f32 %v544
        %v1156 = vand.u32 %v1152, 3
        %vm1157 = vcmp.lt.s32.totalorder %v1156, 2
        %vm1158 = vcmp.eq.s32.totalorder %v1156, 0
        %v1159 = vxor.u32 %v1154, 2147483648
        %v1160 = vsel %vm1158, %v1153, %v1159
        %vm1161 = vcmp.eq.s32.totalorder %v1156, 2
        %v1162 = vxor.u32 %v1153, 2147483648
        %v1163 = vsel %vm1161, %v1162, %v1154
        %v1164 = vsel %vm1157, %v1160, %v1163
        %v1165 = vsel %vm1155, nan, %v1164
        %v1166 = vld [vmem:[%s3] sm:$0xff]
        %v1167 = vld [vmem:[%s3 + $0x8] sm:$0xff]
        %v1168 = vld [vmem:[%s3 + $0x10] sm:$0xff]
        %v1169 = vld [vmem:[%s3 + $0x18] sm:$0xff]
        %v1170 = vld [vmem:[%s4] sm:$0xff]
        %v1171 = vld [vmem:[%s4 + $0x8] sm:$0xff]
        %v1172 = vld [vmem:[%s4 + $0x10] sm:$0xff]
        %v1173 = vld [vmem:[%s4 + $0x18] sm:$0xff]
        %1175 = vset.pattern.permute.xlu0 0
        %1176 = vperm.xlu0 %1175, %v1170
        %v1177 = vpop.permute.xlu0 %1176
        %1180 = vset.pattern.permute.xlu0 0
        %1181 = vperm.xlu0 %1180, %v1171
        %v1182 = vpop.permute.xlu0 %1181
        %1185 = vset.pattern.permute.xlu0 0
        %1186 = vperm.xlu0 %1185, %v1172
        %v1187 = vpop.permute.xlu0 %1186
        %1190 = vset.pattern.permute.xlu0 0
        %1191 = vperm.xlu0 %1190, %v1173
        %v1192 = vpop.permute.xlu0 %1191
        %vm1194 = vcmask 392192
        %v1196 = vsel %vm1194, %v1166, 0
        %v1199 = vsel %vm1194, %v1167, 0
        %v1202 = vsel %vm1194, %v1168, 0
        %v1205 = vsel %vm1194, %v1169, 0
        %1207 = vmatprep.subr.mxu0 0.0
        %1208 = vmatpush1.msra.mxu0 0.0
        %1209 = vmatprep.subr.mxu0 0.0
        %1210 = vmatpush1.msra.mxu0 0.0
        %1211 = vmatprep.subr.mxu0 0.0
        %1212 = vmatpush1.msra.mxu0 0.0
        %1213 = vmatprep.subr.mxu0 0.0
        %1214 = vmatpush1.msra.mxu0 0.0
        %1215 = vmatprep.subr.mxu0 0.0
        %1216 = vmatpush1.msra.mxu0 0.0
        %1217 = vmatprep.subr.mxu0 0.0
        %1218 = vmatpush1.msra.mxu0 0.0
        %1219 = vmatprep.subr.mxu0 0.0
        %1220 = vmatpush1.msra.mxu0 0.0
        %1221 = vmatprep.subr.mxu0 0.0
        %1222 = vmatpush1.msra.mxu0 0.0
        %1223 = vmatprep.subr.mxu0 0.0
        %1224 = vmatpush1.msra.mxu0 0.0
        %1225 = vmatprep.subr.mxu0 0.0
        %1226 = vmatpush1.msra.mxu0 0.0
        %1227 = vmatprep.subr.mxu0 0.0
        %1228 = vmatpush1.msra.mxu0 %v1165
        %1229 = vmatprep.subr.mxu0 0.0
        %1230 = vmatpush1.msra.mxu0 %v1062
        %1231 = vmatprep.subr.mxu0 0.0
        %1232 = vmatpush1.msra.mxu0 %v959
        %1233 = vmatprep.subr.mxu0 0.0
        %1234 = vmatpush1.msra.mxu0 %v856
        %1235 = vmatprep.subr.mxu0 0.0
        %1236 = vmatpush1.msra.mxu0 %v752
        %1237 = vmatprep.subr.mxu0 0.0
        %1238 = vmatpush1.msra.mxu0 %v648
        %1239 = vmatprep.subr.mxu0 0.0
        %1240 = vmatpush2.msra.mxu0 0.0
        %1241 = vmatprep.subr.mxu0 0.0
        %1242 = vmatpush2.msra.mxu0 0.0
        %1243 = vmatprep.subr.mxu0 0.0
        %1244 = vmatpush2.msra.mxu0 0.0
        %1245 = vmatprep.subr.mxu0 0.0
        %1246 = vmatpush2.msra.mxu0 0.0
        %1247 = vmatprep.subr.mxu0 0.0
        %1248 = vmatpush2.msra.mxu0 0.0
        %1249 = vmatprep.subr.mxu0 0.0
        %1250 = vmatpush2.msra.mxu0 0.0
        %1251 = vmatprep.subr.mxu0 0.0
        %1252 = vmatpush2.msra.mxu0 0.0
        %1253 = vmatprep.subr.mxu0 0.0
        %1254 = vmatpush2.msra.mxu0 0.0
        %1255 = vmatprep.subr.mxu0 0.0
        %1256 = vmatpush2.msra.mxu0 0.0
        %1257 = vmatprep.subr.mxu0 0.0
        %1258 = vmatpush2.msra.mxu0 0.0
        %1259 = vmatprep.subr.mxu0 0.0
        %1260 = vmatpush2.msra.mxu0 0.0
        %1261 = vmatprep.subr.mxu0 0.0
        %1262 = vmatpush2.msra.mxu0 0.0
        %1263 = vmatprep.subr.mxu0 0.0
        %1264 = vmatpush2.msra.mxu0 0.0
        %1265 = vmatprep.subr.mxu0 0.0
        %1266 = vmatpush2.msra.mxu0 0.0
        %1267 = vmatprep.subr.mxu0 0.0
        %1268 = vmatpush2.msra.mxu0 0.0
        %1269 = vmatprep.subr.mxu0 0.0
        %1270 = vmatpush2.msra.mxu0 0.0
        %1271 = vmatprep.mubr.f32.mxu0 0.0
        %1272 = vmatmul.mubr.f32.gmra.mxu0 %v1196
        %v1273 = vpop.f32.mrf.mxu0
        %v1274 = vadd.f32 %v1177, %v1273
        %v1275 = vpop.f32.mrf.mxu0
        %1276 = vmatprep.mubr.f32.mxu0 0.0
        %1277 = vmatmul.mubr.f32.gmra.mxu0 %v1199
        %v1278 = vpop.f32.mrf.mxu0
        %v1279 = vadd.f32 %v1182, %v1278
        %v1280 = vpop.f32.mrf.mxu0
        %1281 = vmatprep.mubr.f32.mxu0 0.0
        %1282 = vmatmul.mubr.f32.gmra.mxu0 %v1202
        %v1283 = vpop.f32.mrf.mxu0
        %v1284 = vadd.f32 %v1187, %v1283
        %v1285 = vpop.f32.mrf.mxu0
        %1286 = vmatprep.mubr.f32.mxu0 0.0
        %1287 = vmatmul.mubr.f32.gmra.mxu0 %v1205
        %v1288 = vpop.f32.mrf.mxu0
        %v1289 = vadd.f32 %v1192, %v1288
        %v1290 = vpop.f32.mrf.mxu0
        %1291 = vdwg.mxu0
        %v1292 = vmul.f32 %v1274, 10.0
        %v1293 = vmul.f32 %v1279, 10.0
        %v1294 = vmul.f32 %v1284, 10.0
        %v1295 = vmul.f32 %v1289, 10.0
        %vm1296 = vcmp.gt.f32.partialorder %v1292, 20.0
        %vm1297 = vcmp.gt.f32.partialorder %v1293, 20.0
        %vm1298 = vcmp.gt.f32.partialorder %v1294, 20.0
        %vm1299 = vcmp.gt.f32.partialorder %v1295, 20.0
        %v1300 = vmin.f32 %v1292, 20.0
        %v1301 = vmin.f32 %v1293, 20.0
        %v1302 = vmin.f32 %v1294, 20.0
        %v1303 = vmin.f32 %v1295, 20.0
        %v1304 = vmul.f32 %v1300, 1.442695
        %v1305 = vpow.pop %v1304
        %v1306 = vmul.f32 %v1301, 1.442695
        %v1307 = vpow.pop %v1306
        %v1308 = vmul.f32 %v1302, 1.442695
        %v1309 = vpow.pop %v1308
        %v1310 = vmul.f32 %v1303, 1.442695
        %v1311 = vpow.pop %v1310
        %v1312 = vadd.f32 %v1305, 1.0
        %v1313 = vlog2.pop %v1312
        %v1314 = vmul.f32 %v1313, 0.6931472
        %v1315 = vmul.f32 -0.5, %v1305
        %v1316 = vadd.f32 %v1315, 1.0
        %v1317 = vmul.f32 %v1316, %v1305
        %v1318 = vand.u32 2147483647, %v1305
        %vm1319 = vcmp.lt.f32.partialorder %v1318, 0.0004427343
        %v1320 = vsel %vm1319, %v1317, %v1314
        %v1321 = vadd.f32 %v1307, 1.0
        %v1322 = vlog2.pop %v1321
        %v1323 = vmul.f32 %v1322, 0.6931472
        %v1324 = vmul.f32 -0.5, %v1307
        %v1325 = vadd.f32 %v1324, 1.0
        %v1326 = vmul.f32 %v1325, %v1307
        %v1327 = vand.u32 2147483647, %v1307
        %vm1328 = vcmp.lt.f32.partialorder %v1327, 0.0004427343
        %v1329 = vsel %vm1328, %v1326, %v1323
        %v1330 = vadd.f32 %v1309, 1.0
        %v1331 = vlog2.pop %v1330
        %v1332 = vmul.f32 %v1331, 0.6931472
        %v1333 = vmul.f32 -0.5, %v1309
        %v1334 = vadd.f32 %v1333, 1.0
        %v1335 = vmul.f32 %v1334, %v1309
        %v1336 = vand.u32 2147483647, %v1309
        %vm1337 = vcmp.lt.f32.partialorder %v1336, 0.0004427343
        %v1338 = vsel %vm1337, %v1335, %v1332
        %v1339 = vadd.f32 %v1311, 1.0
        %v1340 = vlog2.pop %v1339
        %v1341 = vmul.f32 %v1340, 0.6931472
        %v1342 = vmul.f32 -0.5, %v1311
        %v1343 = vadd.f32 %v1342, 1.0
        %v1344 = vmul.f32 %v1343, %v1311
        %v1345 = vand.u32 2147483647, %v1311
        %vm1346 = vcmp.lt.f32.partialorder %v1345, 0.0004427343
        %v1347 = vsel %vm1346, %v1344, %v1341
        %v1348 = vrcp.pop 10.0
        %v1349 = vmul.f32 %v1320, %v1348
        %v1350 = vmul.f32 %v1329, %v1348
        %v1351 = vmul.f32 %v1338, %v1348
        %v1352 = vmul.f32 %v1347, %v1348
        %v1353 = vsel %vm1296, %v1274, %v1349
        %v1354 = vsel %vm1297, %v1279, %v1350
        %v1355 = vsel %vm1298, %v1284, %v1351
        %v1356 = vsel %vm1299, %v1289, %v1352
        %v1357 = vld [vmem:[%s5] sm:$0xff]
        %v1358 = vld [vmem:[%s5 + $0x8] sm:$0xff]
        %v1359 = vld [vmem:[%s5 + $0x10] sm:$0xff]
        %v1360 = vld [vmem:[%s5 + $0x18] sm:$0xff]
        %v1361 = vld [vmem:[%s6] sm:$0xff]
        %v1362 = vld [vmem:[%s6 + $0x8] sm:$0xff]
        %v1363 = vld [vmem:[%s6 + $0x10] sm:$0xff]
        %v1364 = vld [vmem:[%s6 + $0x18] sm:$0xff]
        %1366 = vset.pattern.permute.xlu0 0
        %1367 = vperm.xlu0 %1366, %v1361
        %v1368 = vpop.permute.xlu0 %1367
        %1371 = vset.pattern.permute.xlu0 0
        %1372 = vperm.xlu0 %1371, %v1362
        %v1373 = vpop.permute.xlu0 %1372
        %1376 = vset.pattern.permute.xlu0 0
        %1377 = vperm.xlu0 %1376, %v1363
        %v1378 = vpop.permute.xlu0 %1377
        %1381 = vset.pattern.permute.xlu0 0
        %1382 = vperm.xlu0 %1381, %v1364
        %v1383 = vpop.permute.xlu0 %1382
        %vm1385 = vcmask 261120
        %v1387 = vsel %vm1385, %v1357, 0
        %v1390 = vsel %vm1385, %v1358, 0
        %v1393 = vsel %vm1385, %v1359, 0
        %v1396 = vsel %vm1385, %v1360, 0
        %1398 = vmatprep.subr.mxu0 0.0
        %1399 = vmatpush1.msra.mxu0 0.0
        %1400 = vmatprep.subr.mxu0 0.0
        %1401 = vmatpush1.msra.mxu0 0.0
        %1402 = vmatprep.subr.mxu0 0.0
        %1403 = vmatpush1.msra.mxu0 0.0
        %1404 = vmatprep.subr.mxu0 0.0
        %1405 = vmatpush1.msra.mxu0 0.0
        %1406 = vmatprep.subr.mxu0 0.0
        %1407 = vmatpush1.msra.mxu0 0.0
        %1408 = vmatprep.subr.mxu0 0.0
        %1409 = vmatpush1.msra.mxu0 0.0
        %1410 = vmatprep.subr.mxu0 0.0
        %1411 = vmatpush1.msra.mxu0 0.0
        %1412 = vmatprep.subr.mxu0 0.0
        %1413 = vmatpush1.msra.mxu0 0.0
        %1414 = vmatprep.subr.mxu0 0.0
        %1415 = vmatpush1.msra.mxu0 0.0
        %1416 = vmatprep.subr.mxu0 0.0
        %1417 = vmatpush1.msra.mxu0 0.0
        %1418 = vmatprep.subr.mxu0 0.0
        %1419 = vmatpush1.msra.mxu0 0.0
        %1420 = vmatprep.subr.mxu0 0.0
        %1421 = vmatpush1.msra.mxu0 0.0
        %1422 = vmatprep.subr.mxu0 0.0
        %1423 = vmatpush1.msra.mxu0 %v1356
        %1424 = vmatprep.subr.mxu0 0.0
        %1425 = vmatpush1.msra.mxu0 %v1355
        %1426 = vmatprep.subr.mxu0 0.0
        %1427 = vmatpush1.msra.mxu0 %v1354
        %1428 = vmatprep.subr.mxu0 0.0
        %1429 = vmatpush1.msra.mxu0 %v1353
        %1430 = vmatprep.subr.mxu0 0.0
        %1431 = vmatpush2.msra.mxu0 0.0
        %1432 = vmatprep.subr.mxu0 0.0
        %1433 = vmatpush2.msra.mxu0 0.0
        %1434 = vmatprep.subr.mxu0 0.0
        %1435 = vmatpush2.msra.mxu0 0.0
        %1436 = vmatprep.subr.mxu0 0.0
        %1437 = vmatpush2.msra.mxu0 0.0
        %1438 = vmatprep.subr.mxu0 0.0
        %1439 = vmatpush2.msra.mxu0 0.0
        %1440 = vmatprep.subr.mxu0 0.0
        %1441 = vmatpush2.msra.mxu0 0.0
        %1442 = vmatprep.subr.mxu0 0.0
        %1443 = vmatpush2.msra.mxu0 0.0
        %1444 = vmatprep.subr.mxu0 0.0
        %1445 = vmatpush2.msra.mxu0 0.0
        %1446 = vmatprep.subr.mxu0 0.0
        %1447 = vmatpush2.msra.mxu0 0.0
        %1448 = vmatprep.subr.mxu0 0.0
        %1449 = vmatpush2.msra.mxu0 0.0
        %1450 = vmatprep.subr.mxu0 0.0
        %1451 = vmatpush2.msra.mxu0 0.0
        %1452 = vmatprep.subr.mxu0 0.0
        %1453 = vmatpush2.msra.mxu0 0.0
        %1454 = vmatprep.subr.mxu0 0.0
        %1455 = vmatpush2.msra.mxu0 0.0
        %1456 = vmatprep.subr.mxu0 0.0
        %1457 = vmatpush2.msra.mxu0 0.0
        %1458 = vmatprep.subr.mxu0 0.0
        %1459 = vmatpush2.msra.mxu0 0.0
        %1460 = vmatprep.subr.mxu0 0.0
        %1461 = vmatpush2.msra.mxu0 0.0
        %1462 = vmatprep.mubr.f32.mxu0 0.0
        %1463 = vmatmul.mubr.f32.gmra.mxu0 %v1387
        %v1464 = vpop.f32.mrf.mxu0
        %v1465 = vadd.f32 %v1368, %v1464
        %v1466 = vpop.f32.mrf.mxu0
        %1467 = vmatprep.mubr.f32.mxu0 0.0
        %1468 = vmatmul.mubr.f32.gmra.mxu0 %v1390
        %v1469 = vpop.f32.mrf.mxu0
        %v1470 = vadd.f32 %v1373, %v1469
        %v1471 = vpop.f32.mrf.mxu0
        %1472 = vmatprep.mubr.f32.mxu0 0.0
        %1473 = vmatmul.mubr.f32.gmra.mxu0 %v1393
        %v1474 = vpop.f32.mrf.mxu0
        %v1475 = vadd.f32 %v1378, %v1474
        %v1476 = vpop.f32.mrf.mxu0
        %1477 = vmatprep.mubr.f32.mxu0 0.0
        %1478 = vmatmul.mubr.f32.gmra.mxu0 %v1396
        %v1479 = vpop.f32.mrf.mxu0
        %v1480 = vadd.f32 %v1383, %v1479
        %v1481 = vpop.f32.mrf.mxu0
        %1482 = vdwg.mxu0
        %v1483 = vmul.f32 %v1465, 10.0
        %v1484 = vmul.f32 %v1470, 10.0
        %v1485 = vmul.f32 %v1475, 10.0
        %v1486 = vmul.f32 %v1480, 10.0
        %vm1487 = vcmp.gt.f32.partialorder %v1483, 20.0
        %vm1488 = vcmp.gt.f32.partialorder %v1484, 20.0
        %vm1489 = vcmp.gt.f32.partialorder %v1485, 20.0
        %vm1490 = vcmp.gt.f32.partialorder %v1486, 20.0
        %v1491 = vmin.f32 %v1483, 20.0
        %v1492 = vmin.f32 %v1484, 20.0
        %v1493 = vmin.f32 %v1485, 20.0
        %v1494 = vmin.f32 %v1486, 20.0
        %v1495 = vmul.f32 %v1491, 1.442695
        %v1496 = vpow.pop %v1495
        %v1497 = vmul.f32 %v1492, 1.442695
        %v1498 = vpow.pop %v1497
        %v1499 = vmul.f32 %v1493, 1.442695
        %v1500 = vpow.pop %v1499
        %v1501 = vmul.f32 %v1494, 1.442695
        %v1502 = vpow.pop %v1501
        %v1503 = vadd.f32 %v1496, 1.0
        %v1504 = vlog2.pop %v1503
        %v1505 = vmul.f32 %v1504, 0.6931472
        %v1506 = vmul.f32 -0.5, %v1496
        %v1507 = vadd.f32 %v1506, 1.0
        %v1508 = vmul.f32 %v1507, %v1496
        %v1509 = vand.u32 2147483647, %v1496
        %vm1510 = vcmp.lt.f32.partialorder %v1509, 0.0004427343
        %v1511 = vsel %vm1510, %v1508, %v1505
        %v1512 = vadd.f32 %v1498, 1.0
        %v1513 = vlog2.pop %v1512
        %v1514 = vmul.f32 %v1513, 0.6931472
        %v1515 = vmul.f32 -0.5, %v1498
        %v1516 = vadd.f32 %v1515, 1.0
        %v1517 = vmul.f32 %v1516, %v1498
        %v1518 = vand.u32 2147483647, %v1498
        %vm1519 = vcmp.lt.f32.partialorder %v1518, 0.0004427343
        %v1520 = vsel %vm1519, %v1517, %v1514
        %v1521 = vadd.f32 %v1500, 1.0
        %v1522 = vlog2.pop %v1521
        %v1523 = vmul.f32 %v1522, 0.6931472
        %v1524 = vmul.f32 -0.5, %v1500
        %v1525 = vadd.f32 %v1524, 1.0
        %v1526 = vmul.f32 %v1525, %v1500
        %v1527 = vand.u32 2147483647, %v1500
        %vm1528 = vcmp.lt.f32.partialorder %v1527, 0.0004427343
        %v1529 = vsel %vm1528, %v1526, %v1523
        %v1530 = vadd.f32 %v1502, 1.0
        %v1531 = vlog2.pop %v1530
        %v1532 = vmul.f32 %v1531, 0.6931472
        %v1533 = vmul.f32 -0.5, %v1502
        %v1534 = vadd.f32 %v1533, 1.0
        %v1535 = vmul.f32 %v1534, %v1502
        %v1536 = vand.u32 2147483647, %v1502
        %vm1537 = vcmp.lt.f32.partialorder %v1536, 0.0004427343
        %v1538 = vsel %vm1537, %v1535, %v1532
        %v1539 = vmul.f32 %v1511, %v1348
        %v1540 = vmul.f32 %v1520, %v1348
        %v1541 = vmul.f32 %v1529, %v1348
        %v1542 = vmul.f32 %v1538, %v1348
        %v1543 = vsel %vm1487, %v1465, %v1539
        %v1544 = vsel %vm1488, %v1470, %v1540
        %v1545 = vsel %vm1489, %v1475, %v1541
        %v1546 = vsel %vm1490, %v1480, %v1542
        %v1547 = vld [vmem:[%s7] sm:$0x1]
        %v1548 = vld [vmem:[#allocation2] sm:$0x1]
        %1550 = vset.pattern.permute.xlu0 0
        %1551 = vperm.xlu0 %1550, %v1548
        %v1552 = vpop.permute.xlu0 %1551
        %v1554 = vlaneseq
        %v1555 = vshrl.u32 %v1554, 7
        %v1556 = vsub.s32 0, %v1555
        %v1557 = vrot.slane %v1552, %v1556
        %v1559 = vsel %vm1385, %v1547, 0
        %1561 = vmatprep.subr.mxu0 0.0
        %1562 = vmatpush1.msra.mxu0 0.0
        %1563 = vmatprep.subr.mxu0 0.0
        %1564 = vmatpush1.msra.mxu0 0.0
        %1565 = vmatprep.subr.mxu0 0.0
        %1566 = vmatpush1.msra.mxu0 0.0
        %1567 = vmatprep.subr.mxu0 0.0
        %1568 = vmatpush1.msra.mxu0 0.0
        %1569 = vmatprep.subr.mxu0 0.0
        %1570 = vmatpush1.msra.mxu0 0.0
        %1571 = vmatprep.subr.mxu0 0.0
        %1572 = vmatpush1.msra.mxu0 0.0
        %1573 = vmatprep.subr.mxu0 0.0
        %1574 = vmatpush1.msra.mxu0 0.0
        %1575 = vmatprep.subr.mxu0 0.0
        %1576 = vmatpush1.msra.mxu0 0.0
        %1577 = vmatprep.subr.mxu0 0.0
        %1578 = vmatpush1.msra.mxu0 0.0
        %1579 = vmatprep.subr.mxu0 0.0
        %1580 = vmatpush1.msra.mxu0 0.0
        %1581 = vmatprep.subr.mxu0 0.0
        %1582 = vmatpush1.msra.mxu0 0.0
        %1583 = vmatprep.subr.mxu0 0.0
        %1584 = vmatpush1.msra.mxu0 0.0
        %1585 = vmatprep.subr.mxu0 0.0
        %1586 = vmatpush1.msra.mxu0 %v1546
        %1587 = vmatprep.subr.mxu0 0.0
        %1588 = vmatpush1.msra.mxu0 %v1545
        %1589 = vmatprep.subr.mxu0 0.0
        %1590 = vmatpush1.msra.mxu0 %v1544
        %1591 = vmatprep.subr.mxu0 0.0
        %1592 = vmatpush1.msra.mxu0 %v1543
        %1593 = vmatprep.subr.mxu0 0.0
        %1594 = vmatpush2.msra.mxu0 0.0
        %1595 = vmatprep.subr.mxu0 0.0
        %1596 = vmatpush2.msra.mxu0 0.0
        %1597 = vmatprep.subr.mxu0 0.0
        %1598 = vmatpush2.msra.mxu0 0.0
        %1599 = vmatprep.subr.mxu0 0.0
        %1600 = vmatpush2.msra.mxu0 0.0
        %1601 = vmatprep.subr.mxu0 0.0
        %1602 = vmatpush2.msra.mxu0 0.0
        %1603 = vmatprep.subr.mxu0 0.0
        %1604 = vmatpush2.msra.mxu0 0.0
        %1605 = vmatprep.subr.mxu0 0.0
        %1606 = vmatpush2.msra.mxu0 0.0
        %1607 = vmatprep.subr.mxu0 0.0
        %1608 = vmatpush2.msra.mxu0 0.0
        %1609 = vmatprep.subr.mxu0 0.0
        %1610 = vmatpush2.msra.mxu0 0.0
        %1611 = vmatprep.subr.mxu0 0.0
        %1612 = vmatpush2.msra.mxu0 0.0
        %1613 = vmatprep.subr.mxu0 0.0
        %1614 = vmatpush2.msra.mxu0 0.0
        %1615 = vmatprep.subr.mxu0 0.0
        %1616 = vmatpush2.msra.mxu0 0.0
        %1617 = vmatprep.subr.mxu0 0.0
        %1618 = vmatpush2.msra.mxu0 0.0
        %1619 = vmatprep.subr.mxu0 0.0
        %1620 = vmatpush2.msra.mxu0 0.0
        %1621 = vmatprep.subr.mxu0 0.0
        %1622 = vmatpush2.msra.mxu0 0.0
        %1623 = vmatprep.subr.mxu0 0.0
        %1624 = vmatpush2.msra.mxu0 0.0
        %1625 = vmatprep.mubr.f32.mxu0 0.0
        %1626 = vmatmul.mubr.f32.gmra.mxu0 %v1559
        %v1627 = vpop.f32.mrf.mxu0
        %v1628 = vadd.f32 %v1557, %v1627
        %v1629 = vpop.f32.mrf.mxu0
        %1630 = vdwg.mxu0
        %v1631 = vmul.f32 %v1628, 10.0
        %vm1632 = vcmp.gt.f32.partialorder %v1631, 20.0
        %v1633 = vmin.f32 %v1631, 20.0
        %v1634 = vmul.f32 %v1633, 1.442695
        %v1635 = vpow.pop %v1634
        %v1636 = vadd.f32 %v1635, 1.0
        %v1637 = vlog2.pop %v1636
        %v1638 = vmul.f32 %v1637, 0.6931472
        %v1639 = vmul.f32 -0.5, %v1635
        %v1640 = vadd.f32 %v1639, 1.0
        %v1641 = vmul.f32 %v1640, %v1635
        %v1642 = vand.u32 2147483647, %v1635
        %vm1643 = vcmp.lt.f32.partialorder %v1642, 0.0004427343
        %v1644 = vsel %vm1643, %v1641, %v1638
        %v1645 = vmul.f32 %v1644, %v1348
        %v1646 = vsel %vm1632, %v1628, %v1645
        %v1647 = vsub.f32 0.0, %v1646
        %v1648 = vmul.f32 %v1647, 1.442695
        %v1649 = vpow.pop %v1648
        %v1650 = vsub.f32 1.0, %v1649
        %1651 = vst [vmem:[%s521] sm:$0x1] %v1650
        %v1652 = vmul.f32 %v524, %v524
        %vm1653 = vcmask 1042432
        %v1654 = vsel %vm1653, %v1652, 0.0
        %v1655 = vrot.slane %v1654, 4
        %v1656 = vadd.f32 %v1654, %v1655
        %v1657 = vrot.slane %v1656, 2
        %v1658 = vadd.f32 %v1656, %v1657
        %v1659 = vrot.slane %v1658, 1
        %v1660 = vadd.f32 %v1658, %v1659
        %v1661 = vmax.f32 %v1660, 1e-24
        %v1662 = vrsqrt.pop %v1661
        %v1663 = vmul.f32 %v524, %v1662
        %v1664 = vlaneseq
        %v1665 = vshrl.u32 %v1664, 7
        %v1666 = vsub.s32 0, %v1665
        %v1667 = vrot.slane %v1663, %v1666
        %v1668 = vmul.f32 %v528, %v1667
        %v1669 = vlaneseq
        %v1670 = vshrl.u32 %v1669, 7
        %v1671 = vsub.s32 1, %v1670
        %v1672 = vrot.slane %v1663, %v1671
        %v1673 = vmul.f32 %v528, %v1672
        %v1674 = vlaneseq
        %v1675 = vshrl.u32 %v1674, 7
        %v1676 = vsub.s32 2, %v1675
        %v1677 = vrot.slane %v1663, %v1676
        %v1678 = vmul.f32 %v528, %v1677
        %v1679 = vand.u32 2147483647, %v1668
        %vm1680 = vcmp.le.f32.partialorder %v1679, 0.7853982
        %vm1681 = vcmp.lt.s32.totalorder %v1668, 0
        %v1682 = vand.u32 %v1668, 2139095040
        %v1683 = vshrl.u32 %v1682, 23
        %v1684 = vsub.s32 %v1683, 127
        %v1685 = vand.u32 2147483647, %v1668
        %v1686 = vand.u32 %v1685, 8388607
        %v1687 = vor.u32 %v1686, 8388608
        %v1688 = vsub.s32 0, %v1687
        %v1689 = vadd.s32 %v1684, 1
        %vm1690 = vcmp.gt.s32.totalorder %v1689, 0
        %v1691 = vsel %vm1690, %v1689, 0
        %v1692 = vshrl.u32 %v1691, 5
        %v1693 = vand.u32 %v1691, 31
        %v1694 = vsub.s32 32, %v1693
        %v1695 = vshrl.u32 683565275, %v1694
        %v1696 = vshll.u32 683565275, %v1693
        %v1697 = vshrl.u32 2475754826, %v1694
        %v1698 = vor.u32 %v1696, %v1697
        %v1699 = vshll.u32 2475754826, %v1693
        %v1700 = vshrl.u32 2131351028, %v1694
        %v1701 = vor.u32 %v1699, %v1700
        %v1702 = vshll.u32 2131351028, %v1693
        %v1703 = vshrl.u32 2102212464, %v1694
        %v1704 = vor.u32 %v1702, %v1703
        %v1705 = vshll.u32 2102212464, %v1693
        %v1706 = vshrl.u32 920167782, %v1694
        %v1707 = vor.u32 %v1705, %v1706
        %v1708 = vshll.u32 920167782, %v1693
        %v1709 = vshrl.u32 1326507024, %v1694
        %v1710 = vor.u32 %v1708, %v1709
        %vm1711 = vcmp.lt.s32.totalorder %v1692, 1
        %vm1712 = vcmp.lt.s32.totalorder %v1692, 2
        %vm1713 = vcmp.lt.s32.totalorder %v1692, 3
        %vm1714 = vcmp.lt.s32.totalorder %v1692, 4
        %v1715 = vsel %vm1711, %v1695, %v1698
        %v1716 = vsel %vm1714, %v1704, 2102212464
        %v1717 = vsel %vm1713, %v1701, %v1716
        %v1718 = vsel %vm1712, %v1715, %v1717
        %v1719 = vsel %vm1711, %v1698, %v1701
        %v1720 = vsel %vm1714, %v1707, 920167782
        %v1721 = vsel %vm1713, %v1704, %v1720
        %v1722 = vsel %vm1712, %v1719, %v1721
        %v1723 = vsel %vm1711, %v1701, %v1704
        %v1724 = vsel %vm1714, %v1710, 1326507024
        %v1725 = vsel %vm1713, %v1707, %v1724
        %v1726 = vsel %vm1712, %v1723, %v1725
        %v1727 = vshll.u32 %v1687, 8
        %v1728 = vmul.u32.u64.compose %v1727, %v1726
        %v1729 = vextract.low.u32 %v1728
        %v1730 = vextract.high.u32 %v1728
        %v1731 = vmul.u32.u64.compose %v1727, %v1722
        %v1732 = vextract.low.u32 %v1731
        %v1733 = vextract.high.u32 %v1731
        %v1734 = vmul.u32 %v1727, %v1718
        %v1735 = vadd.s32 %v1730, %v1732
        %vm1736 = vc.u32 %v1730, %v1732
        %v1737 = vadd.s32 %v1733, 1
        %v1738 = vsel %vm1736, %v1737, %v1733
        %v1739 = vadd.s32 %v1734, %v1738
        %v1740 = vadd.s32 %v1739, 536870912
        %v1741 = vshrl.u32 %v1740, 30
        %v1742 = vshll.u32 %v1741, 30
        %v1743 = vsub.s32 %v1739, %v1742
        %vm1744 = vcmp.lt.s32.totalorder %v1743, 0
        %v1745 = vsub.s32 0, %v1743
        %v1746 = vsel %vm1744, %v1745, %v1743
        %v1747 = vclz %v1746
        %v1748 = vsub.s32 %v1747, 2
        %vm1749 = vcmp.gt.s32.totalorder 0, %v1748
        %v1750 = vsel %vm1749, 0, %v1748
        %v1751 = vsub.s32 32, %v1750
        %v1752 = vshll.u32 %v1743, %v1750
        %v1753 = vshrl.u32 %v1735, %v1751
        %v1754 = vor.u32 %v1752, %v1753
        %v1755 = vsub.s32 4294967266, %v1750
        %v1756 = vadd.s32 %v1755, 127
        %v1757 = vshll.u32 %v1756, 23
        %v1758 = vor.u32 4788187, %v1757
        %v1759 = vand.u32 2147483647, %v1758
        %v1761 = vcvt.s32.f32 %v1754
        %v1762 = vmul.f32 %v1761, %v1759
        %v1763 = vxor.u32 %v1762, 2147483648
        %v1764 = vsel %vm1681, %v1763, %v1762
        %v1765 = vsub.s32 4, %v1741
        %v1766 = vsel %vm1681, %v1765, %v1741
        %v1767 = vsel %vm1680, %v1668, %v1764
        %v1768 = vsel %vm1680, 0, %v1766
        %v1769 = vcosq.f32.pop %v1767
        %v1770 = vsinq.f32.pop %v1767
        %vm1771 = vweird.f32 %v1668
        %v1772 = vadd.s32 %v1768, 3
        %v1773 = vand.u32 %v1772, 3
        %vm1774 = vcmp.lt.s32.totalorder %v1773, 2
        %vm1775 = vcmp.eq.s32.totalorder %v1773, 0
        %v1776 = vxor.u32 %v1770, 2147483648
        %v1777 = vsel %vm1775, %v1769, %v1776
        %vm1778 = vcmp.eq.s32.totalorder %v1773, 2
        %v1779 = vxor.u32 %v1769, 2147483648
        %v1780 = vsel %vm1778, %v1779, %v1770
        %v1781 = vsel %vm1774, %v1777, %v1780
        %v1782 = vsel %vm1771, nan, %v1781
        %v1783 = vand.u32 2147483647, %v1673
        %vm1784 = vcmp.le.f32.partialorder %v1783, 0.7853982
        %vm1785 = vcmp.lt.s32.totalorder %v1673, 0
        %v1786 = vand.u32 %v1673, 2139095040
        %v1787 = vshrl.u32 %v1786, 23
        %v1788 = vsub.s32 %v1787, 127
        %v1789 = vand.u32 2147483647, %v1673
        %v1790 = vand.u32 %v1789, 8388607
        %v1791 = vor.u32 %v1790, 8388608
        %v1792 = vsub.s32 0, %v1791
        %v1793 = vadd.s32 %v1788, 1
        %vm1794 = vcmp.gt.s32.totalorder %v1793, 0
        %v1795 = vsel %vm1794, %v1793, 0
        %v1796 = vshrl.u32 %v1795, 5
        %v1797 = vand.u32 %v1795, 31
        %v1798 = vsub.s32 32, %v1797
        %v1799 = vshrl.u32 683565275, %v1798
        %v1800 = vshll.u32 683565275, %v1797
        %v1801 = vshrl.u32 2475754826, %v1798
        %v1802 = vor.u32 %v1800, %v1801
        %v1803 = vshll.u32 2475754826, %v1797
        %v1804 = vshrl.u32 2131351028, %v1798
        %v1805 = vor.u32 %v1803, %v1804
        %v1806 = vshll.u32 2131351028, %v1797
        %v1807 = vshrl.u32 2102212464, %v1798
        %v1808 = vor.u32 %v1806, %v1807
        %v1809 = vshll.u32 2102212464, %v1797
        %v1810 = vshrl.u32 920167782, %v1798
        %v1811 = vor.u32 %v1809, %v1810
        %v1812 = vshll.u32 920167782, %v1797
        %v1813 = vshrl.u32 1326507024, %v1798
        %v1814 = vor.u32 %v1812, %v1813
        %vm1815 = vcmp.lt.s32.totalorder %v1796, 1
        %vm1816 = vcmp.lt.s32.totalorder %v1796, 2
        %vm1817 = vcmp.lt.s32.totalorder %v1796, 3
        %vm1818 = vcmp.lt.s32.totalorder %v1796, 4
        %v1819 = vsel %vm1815, %v1799, %v1802
        %v1820 = vsel %vm1818, %v1808, 2102212464
        %v1821 = vsel %vm1817, %v1805, %v1820
        %v1822 = vsel %vm1816, %v1819, %v1821
        %v1823 = vsel %vm1815, %v1802, %v1805
        %v1824 = vsel %vm1818, %v1811, 920167782
        %v1825 = vsel %vm1817, %v1808, %v1824
        %v1826 = vsel %vm1816, %v1823, %v1825
        %v1827 = vsel %vm1815, %v1805, %v1808
        %v1828 = vsel %vm1818, %v1814, 1326507024
        %v1829 = vsel %vm1817, %v1811, %v1828
        %v1830 = vsel %vm1816, %v1827, %v1829
        %v1831 = vshll.u32 %v1791, 8
        %v1832 = vmul.u32.u64.compose %v1831, %v1830
        %v1833 = vextract.low.u32 %v1832
        %v1834 = vextract.high.u32 %v1832
        %v1835 = vmul.u32.u64.compose %v1831, %v1826
        %v1836 = vextract.low.u32 %v1835
        %v1837 = vextract.high.u32 %v1835
        %v1838 = vmul.u32 %v1831, %v1822
        %v1839 = vadd.s32 %v1834, %v1836
        %vm1840 = vc.u32 %v1834, %v1836
        %v1841 = vadd.s32 %v1837, 1
        %v1842 = vsel %vm1840, %v1841, %v1837
        %v1843 = vadd.s32 %v1838, %v1842
        %v1844 = vadd.s32 %v1843, 536870912
        %v1845 = vshrl.u32 %v1844, 30
        %v1846 = vshll.u32 %v1845, 30
        %v1847 = vsub.s32 %v1843, %v1846
        %vm1848 = vcmp.lt.s32.totalorder %v1847, 0
        %v1849 = vsub.s32 0, %v1847
        %v1850 = vsel %vm1848, %v1849, %v1847
        %v1851 = vclz %v1850
        %v1852 = vsub.s32 %v1851, 2
        %vm1853 = vcmp.gt.s32.totalorder 0, %v1852
        %v1854 = vsel %vm1853, 0, %v1852
        %v1855 = vsub.s32 32, %v1854
        %v1856 = vshll.u32 %v1847, %v1854
        %v1857 = vshrl.u32 %v1839, %v1855
        %v1858 = vor.u32 %v1856, %v1857
        %v1859 = vsub.s32 4294967266, %v1854
        %v1860 = vadd.s32 %v1859, 127
        %v1861 = vshll.u32 %v1860, 23
        %v1862 = vor.u32 4788187, %v1861
        %v1863 = vand.u32 2147483647, %v1862
        %v1865 = vcvt.s32.f32 %v1858
        %v1866 = vmul.f32 %v1865, %v1863
        %v1867 = vxor.u32 %v1866, 2147483648
        %v1868 = vsel %vm1785, %v1867, %v1866
        %v1869 = vsub.s32 4, %v1845
        %v1870 = vsel %vm1785, %v1869, %v1845
        %v1871 = vsel %vm1784, %v1673, %v1868
        %v1872 = vsel %vm1784, 0, %v1870
        %v1873 = vcosq.f32.pop %v1871
        %v1874 = vsinq.f32.pop %v1871
        %vm1875 = vweird.f32 %v1673
        %v1876 = vadd.s32 %v1872, 3
        %v1877 = vand.u32 %v1876, 3
        %vm1878 = vcmp.lt.s32.totalorder %v1877, 2
        %vm1879 = vcmp.eq.s32.totalorder %v1877, 0
        %v1880 = vxor.u32 %v1874, 2147483648
        %v1881 = vsel %vm1879, %v1873, %v1880
        %vm1882 = vcmp.eq.s32.totalorder %v1877, 2
        %v1883 = vxor.u32 %v1873, 2147483648
        %v1884 = vsel %vm1882, %v1883, %v1874
        %v1885 = vsel %vm1878, %v1881, %v1884
        %v1886 = vsel %vm1875, nan, %v1885
        %v1887 = vand.u32 2147483647, %v1678
        %vm1888 = vcmp.le.f32.partialorder %v1887, 0.7853982
        %vm1889 = vcmp.lt.s32.totalorder %v1678, 0
        %v1890 = vand.u32 %v1678, 2139095040
        %v1891 = vshrl.u32 %v1890, 23
        %v1892 = vsub.s32 %v1891, 127
        %v1893 = vand.u32 2147483647, %v1678
        %v1894 = vand.u32 %v1893, 8388607
        %v1895 = vor.u32 %v1894, 8388608
        %v1896 = vsub.s32 0, %v1895
        %v1897 = vadd.s32 %v1892, 1
        %vm1898 = vcmp.gt.s32.totalorder %v1897, 0
        %v1899 = vsel %vm1898, %v1897, 0
        %v1900 = vshrl.u32 %v1899, 5
        %v1901 = vand.u32 %v1899, 31
        %v1902 = vsub.s32 32, %v1901
        %v1903 = vshrl.u32 683565275, %v1902
        %v1904 = vshll.u32 683565275, %v1901
        %v1905 = vshrl.u32 2475754826, %v1902
        %v1906 = vor.u32 %v1904, %v1905
        %v1907 = vshll.u32 2475754826, %v1901
        %v1908 = vshrl.u32 2131351028, %v1902
        %v1909 = vor.u32 %v1907, %v1908
        %v1910 = vshll.u32 2131351028, %v1901
        %v1911 = vshrl.u32 2102212464, %v1902
        %v1912 = vor.u32 %v1910, %v1911
        %v1913 = vshll.u32 2102212464, %v1901
        %v1914 = vshrl.u32 920167782, %v1902
        %v1915 = vor.u32 %v1913, %v1914
        %v1916 = vshll.u32 920167782, %v1901
        %v1917 = vshrl.u32 1326507024, %v1902
        %v1918 = vor.u32 %v1916, %v1917
        %vm1919 = vcmp.lt.s32.totalorder %v1900, 1
        %vm1920 = vcmp.lt.s32.totalorder %v1900, 2
        %vm1921 = vcmp.lt.s32.totalorder %v1900, 3
        %vm1922 = vcmp.lt.s32.totalorder %v1900, 4
        %v1923 = vsel %vm1919, %v1903, %v1906
        %v1924 = vsel %vm1922, %v1912, 2102212464
        %v1925 = vsel %vm1921, %v1909, %v1924
        %v1926 = vsel %vm1920, %v1923, %v1925
        %v1927 = vsel %vm1919, %v1906, %v1909
        %v1928 = vsel %vm1922, %v1915, 920167782
        %v1929 = vsel %vm1921, %v1912, %v1928
        %v1930 = vsel %vm1920, %v1927, %v1929
        %v1931 = vsel %vm1919, %v1909, %v1912
        %v1932 = vsel %vm1922, %v1918, 1326507024
        %v1933 = vsel %vm1921, %v1915, %v1932
        %v1934 = vsel %vm1920, %v1931, %v1933
        %v1935 = vshll.u32 %v1895, 8
        %v1936 = vmul.u32.u64.compose %v1935, %v1934
        %v1937 = vextract.low.u32 %v1936
        %v1938 = vextract.high.u32 %v1936
        %v1939 = vmul.u32.u64.compose %v1935, %v1930
        %v1940 = vextract.low.u32 %v1939
        %v1941 = vextract.high.u32 %v1939
        %v1942 = vmul.u32 %v1935, %v1926
        %v1943 = vadd.s32 %v1938, %v1940
        %vm1944 = vc.u32 %v1938, %v1940
        %v1945 = vadd.s32 %v1941, 1
        %v1946 = vsel %vm1944, %v1945, %v1941
        %v1947 = vadd.s32 %v1942, %v1946
        %v1948 = vadd.s32 %v1947, 536870912
        %v1949 = vshrl.u32 %v1948, 30
        %v1950 = vshll.u32 %v1949, 30
        %v1951 = vsub.s32 %v1947, %v1950
        %vm1952 = vcmp.lt.s32.totalorder %v1951, 0
        %v1953 = vsub.s32 0, %v1951
        %v1954 = vsel %vm1952, %v1953, %v1951
        %v1955 = vclz %v1954
        %v1956 = vsub.s32 %v1955, 2
        %vm1957 = vcmp.gt.s32.totalorder 0, %v1956
        %v1958 = vsel %vm1957, 0, %v1956
        %v1959 = vsub.s32 32, %v1958
        %v1960 = vshll.u32 %v1951, %v1958
        %v1961 = vshrl.u32 %v1943, %v1959
        %v1962 = vor.u32 %v1960, %v1961
        %v1963 = vsub.s32 4294967266, %v1958
        %v1964 = vadd.s32 %v1963, 127
        %v1965 = vshll.u32 %v1964, 23
        %v1966 = vor.u32 4788187, %v1965
        %v1967 = vand.u32 2147483647, %v1966
        %v1969 = vcvt.s32.f32 %v1962
        %v1970 = vmul.f32 %v1969, %v1967
        %v1971 = vxor.u32 %v1970, 2147483648
        %v1972 = vsel %vm1889, %v1971, %v1970
        %v1973 = vsub.s32 4, %v1949
        %v1974 = vsel %vm1889, %v1973, %v1949
        %v1975 = vsel %vm1888, %v1678, %v1972
        %v1976 = vsel %vm1888, 0, %v1974
        %v1977 = vcosq.f32.pop %v1975
        %v1978 = vsinq.f32.pop %v1975
        %vm1979 = vweird.f32 %v1678
        %v1980 = vadd.s32 %v1976, 3
        %v1981 = vand.u32 %v1980, 3
        %vm1982 = vcmp.lt.s32.totalorder %v1981, 2
        %vm1983 = vcmp.eq.s32.totalorder %v1981, 0
        %v1984 = vxor.u32 %v1978, 2147483648
        %v1985 = vsel %vm1983, %v1977, %v1984
        %vm1986 = vcmp.eq.s32.totalorder %v1981, 2
        %v1987 = vxor.u32 %v1977, 2147483648
        %v1988 = vsel %vm1986, %v1987, %v1978
        %v1989 = vsel %vm1982, %v1985, %v1988
        %v1990 = vsel %vm1979, nan, %v1989
        %v1991 = vand.u32 2147483647, %v1668
        %vm1992 = vcmp.le.f32.partialorder %v1991, 0.7853982
        %vm1993 = vcmp.lt.s32.totalorder %v1668, 0
        %v1994 = vand.u32 %v1668, 2139095040
        %v1995 = vshrl.u32 %v1994, 23
        %v1996 = vsub.s32 %v1995, 127
        %v1997 = vand.u32 2147483647, %v1668
        %v1998 = vand.u32 %v1997, 8388607
        %v1999 = vor.u32 %v1998, 8388608
        %v2000 = vsub.s32 0, %v1999
        %v2001 = vadd.s32 %v1996, 1
        %vm2002 = vcmp.gt.s32.totalorder %v2001, 0
        %v2003 = vsel %vm2002, %v2001, 0
        %v2004 = vshrl.u32 %v2003, 5
        %v2005 = vand.u32 %v2003, 31
        %v2006 = vsub.s32 32, %v2005
        %v2007 = vshrl.u32 683565275, %v2006
        %v2008 = vshll.u32 683565275, %v2005
        %v2009 = vshrl.u32 2475754826, %v2006
        %v2010 = vor.u32 %v2008, %v2009
        %v2011 = vshll.u32 2475754826, %v2005
        %v2012 = vshrl.u32 2131351028, %v2006
        %v2013 = vor.u32 %v2011, %v2012
        %v2014 = vshll.u32 2131351028, %v2005
        %v2015 = vshrl.u32 2102212464, %v2006
        %v2016 = vor.u32 %v2014, %v2015
        %v2017 = vshll.u32 2102212464, %v2005
        %v2018 = vshrl.u32 920167782, %v2006
        %v2019 = vor.u32 %v2017, %v2018
        %v2020 = vshll.u32 920167782, %v2005
        %v2021 = vshrl.u32 1326507024, %v2006
        %v2022 = vor.u32 %v2020, %v2021
        %vm2023 = vcmp.lt.s32.totalorder %v2004, 1
        %vm2024 = vcmp.lt.s32.totalorder %v2004, 2
        %vm2025 = vcmp.lt.s32.totalorder %v2004, 3
        %vm2026 = vcmp.lt.s32.totalorder %v2004, 4
        %v2027 = vsel %vm2023, %v2007, %v2010
        %v2028 = vsel %vm2026, %v2016, 2102212464
        %v2029 = vsel %vm2025, %v2013, %v2028
        %v2030 = vsel %vm2024, %v2027, %v2029
        %v2031 = vsel %vm2023, %v2010, %v2013
        %v2032 = vsel %vm2026, %v2019, 920167782
        %v2033 = vsel %vm2025, %v2016, %v2032
        %v2034 = vsel %vm2024, %v2031, %v2033
        %v2035 = vsel %vm2023, %v2013, %v2016
        %v2036 = vsel %vm2026, %v2022, 1326507024
        %v2037 = vsel %vm2025, %v2019, %v2036
        %v2038 = vsel %vm2024, %v2035, %v2037
        %v2039 = vshll.u32 %v1999, 8
        %v2040 = vmul.u32.u64.compose %v2039, %v2038
        %v2041 = vextract.low.u32 %v2040
        %v2042 = vextract.high.u32 %v2040
        %v2043 = vmul.u32.u64.compose %v2039, %v2034
        %v2044 = vextract.low.u32 %v2043
        %v2045 = vextract.high.u32 %v2043
        %v2046 = vmul.u32 %v2039, %v2030
        %v2047 = vadd.s32 %v2042, %v2044
        %vm2048 = vc.u32 %v2042, %v2044
        %v2049 = vadd.s32 %v2045, 1
        %v2050 = vsel %vm2048, %v2049, %v2045
        %v2051 = vadd.s32 %v2046, %v2050
        %v2052 = vadd.s32 %v2051, 536870912
        %v2053 = vshrl.u32 %v2052, 30
        %v2054 = vshll.u32 %v2053, 30
        %v2055 = vsub.s32 %v2051, %v2054
        %vm2056 = vcmp.lt.s32.totalorder %v2055, 0
        %v2057 = vsub.s32 0, %v2055
        %v2058 = vsel %vm2056, %v2057, %v2055
        %v2059 = vclz %v2058
        %v2060 = vsub.s32 %v2059, 2
        %vm2061 = vcmp.gt.s32.totalorder 0, %v2060
        %v2062 = vsel %vm2061, 0, %v2060
        %v2063 = vsub.s32 32, %v2062
        %v2064 = vshll.u32 %v2055, %v2062
        %v2065 = vshrl.u32 %v2047, %v2063
        %v2066 = vor.u32 %v2064, %v2065
        %v2067 = vsub.s32 4294967266, %v2062
        %v2068 = vadd.s32 %v2067, 127
        %v2069 = vshll.u32 %v2068, 23
        %v2070 = vor.u32 4788187, %v2069
        %v2071 = vand.u32 2147483647, %v2070
        %v2073 = vcvt.s32.f32 %v2066
        %v2074 = vmul.f32 %v2073, %v2071
        %v2075 = vxor.u32 %v2074, 2147483648
        %v2076 = vsel %vm1993, %v2075, %v2074
        %v2077 = vsub.s32 4, %v2053
        %v2078 = vsel %vm1993, %v2077, %v2053
        %v2079 = vsel %vm1992, %v1668, %v2076
        %v2080 = vsel %vm1992, 0, %v2078
        %v2081 = vcosq.f32.pop %v2079
        %v2082 = vsinq.f32.pop %v2079
        %vm2083 = vweird.f32 %v1668
        %v2084 = vand.u32 %v2080, 3
        %vm2085 = vcmp.lt.s32.totalorder %v2084, 2
        %vm2086 = vcmp.eq.s32.totalorder %v2084, 0
        %v2087 = vxor.u32 %v2082, 2147483648
        %v2088 = vsel %vm2086, %v2081, %v2087
        %vm2089 = vcmp.eq.s32.totalorder %v2084, 2
        %v2090 = vxor.u32 %v2081, 2147483648
        %v2091 = vsel %vm2089, %v2090, %v2082
        %v2092 = vsel %vm2085, %v2088, %v2091
        %v2093 = vsel %vm2083, nan, %v2092
        %v2094 = vand.u32 2147483647, %v1673
        %vm2095 = vcmp.le.f32.partialorder %v2094, 0.7853982
        %vm2096 = vcmp.lt.s32.totalorder %v1673, 0
        %v2097 = vand.u32 %v1673, 2139095040
        %v2098 = vshrl.u32 %v2097, 23
        %v2099 = vsub.s32 %v2098, 127
        %v2100 = vand.u32 2147483647, %v1673
        %v2101 = vand.u32 %v2100, 8388607
        %v2102 = vor.u32 %v2101, 8388608
        %v2103 = vsub.s32 0, %v2102
        %v2104 = vadd.s32 %v2099, 1
        %vm2105 = vcmp.gt.s32.totalorder %v2104, 0
        %v2106 = vsel %vm2105, %v2104, 0
        %v2107 = vshrl.u32 %v2106, 5
        %v2108 = vand.u32 %v2106, 31
        %v2109 = vsub.s32 32, %v2108
        %v2110 = vshrl.u32 683565275, %v2109
        %v2111 = vshll.u32 683565275, %v2108
        %v2112 = vshrl.u32 2475754826, %v2109
        %v2113 = vor.u32 %v2111, %v2112
        %v2114 = vshll.u32 2475754826, %v2108
        %v2115 = vshrl.u32 2131351028, %v2109
        %v2116 = vor.u32 %v2114, %v2115
        %v2117 = vshll.u32 2131351028, %v2108
        %v2118 = vshrl.u32 2102212464, %v2109
        %v2119 = vor.u32 %v2117, %v2118
        %v2120 = vshll.u32 2102212464, %v2108
        %v2121 = vshrl.u32 920167782, %v2109
        %v2122 = vor.u32 %v2120, %v2121
        %v2123 = vshll.u32 920167782, %v2108
        %v2124 = vshrl.u32 1326507024, %v2109
        %v2125 = vor.u32 %v2123, %v2124
        %vm2126 = vcmp.lt.s32.totalorder %v2107, 1
        %vm2127 = vcmp.lt.s32.totalorder %v2107, 2
        %vm2128 = vcmp.lt.s32.totalorder %v2107, 3
        %vm2129 = vcmp.lt.s32.totalorder %v2107, 4
        %v2130 = vsel %vm2126, %v2110, %v2113
        %v2131 = vsel %vm2129, %v2119, 2102212464
        %v2132 = vsel %vm2128, %v2116, %v2131
        %v2133 = vsel %vm2127, %v2130, %v2132
        %v2134 = vsel %vm2126, %v2113, %v2116
        %v2135 = vsel %vm2129, %v2122, 920167782
        %v2136 = vsel %vm2128, %v2119, %v2135
        %v2137 = vsel %vm2127, %v2134, %v2136
        %v2138 = vsel %vm2126, %v2116, %v2119
        %v2139 = vsel %vm2129, %v2125, 1326507024
        %v2140 = vsel %vm2128, %v2122, %v2139
        %v2141 = vsel %vm2127, %v2138, %v2140
        %v2142 = vshll.u32 %v2102, 8
        %v2143 = vmul.u32.u64.compose %v2142, %v2141
        %v2144 = vextract.low.u32 %v2143
        %v2145 = vextract.high.u32 %v2143
        %v2146 = vmul.u32.u64.compose %v2142, %v2137
        %v2147 = vextract.low.u32 %v2146
        %v2148 = vextract.high.u32 %v2146
        %v2149 = vmul.u32 %v2142, %v2133
        %v2150 = vadd.s32 %v2145, %v2147
        %vm2151 = vc.u32 %v2145, %v2147
        %v2152 = vadd.s32 %v2148, 1
        %v2153 = vsel %vm2151, %v2152, %v2148
        %v2154 = vadd.s32 %v2149, %v2153
        %v2155 = vadd.s32 %v2154, 536870912
        %v2156 = vshrl.u32 %v2155, 30
        %v2157 = vshll.u32 %v2156, 30
        %v2158 = vsub.s32 %v2154, %v2157
        %vm2159 = vcmp.lt.s32.totalorder %v2158, 0
        %v2160 = vsub.s32 0, %v2158
        %v2161 = vsel %vm2159, %v2160, %v2158
        %v2162 = vclz %v2161
        %v2163 = vsub.s32 %v2162, 2
        %vm2164 = vcmp.gt.s32.totalorder 0, %v2163
        %v2165 = vsel %vm2164, 0, %v2163
        %v2166 = vsub.s32 32, %v2165
        %v2167 = vshll.u32 %v2158, %v2165
        %v2168 = vshrl.u32 %v2150, %v2166
        %v2169 = vor.u32 %v2167, %v2168
        %v2170 = vsub.s32 4294967266, %v2165
        %v2171 = vadd.s32 %v2170, 127
        %v2172 = vshll.u32 %v2171, 23
        %v2173 = vor.u32 4788187, %v2172
        %v2174 = vand.u32 2147483647, %v2173
        %v2176 = vcvt.s32.f32 %v2169
        %v2177 = vmul.f32 %v2176, %v2174
        %v2178 = vxor.u32 %v2177, 2147483648
        %v2179 = vsel %vm2096, %v2178, %v2177
        %v2180 = vsub.s32 4, %v2156
        %v2181 = vsel %vm2096, %v2180, %v2156
        %v2182 = vsel %vm2095, %v1673, %v2179
        %v2183 = vsel %vm2095, 0, %v2181
        %v2184 = vcosq.f32.pop %v2182
        %v2185 = vsinq.f32.pop %v2182
        %vm2186 = vweird.f32 %v1673
        %v2187 = vand.u32 %v2183, 3
        %vm2188 = vcmp.lt.s32.totalorder %v2187, 2
        %vm2189 = vcmp.eq.s32.totalorder %v2187, 0
        %v2190 = vxor.u32 %v2185, 2147483648
        %v2191 = vsel %vm2189, %v2184, %v2190
        %vm2192 = vcmp.eq.s32.totalorder %v2187, 2
        %v2193 = vxor.u32 %v2184, 2147483648
        %v2194 = vsel %vm2192, %v2193, %v2185
        %v2195 = vsel %vm2188, %v2191, %v2194
        %v2196 = vsel %vm2186, nan, %v2195
        %v2197 = vand.u32 2147483647, %v1678
        %vm2198 = vcmp.le.f32.partialorder %v2197, 0.7853982
        %vm2199 = vcmp.lt.s32.totalorder %v1678, 0
        %v2200 = vand.u32 %v1678, 2139095040
        %v2201 = vshrl.u32 %v2200, 23
        %v2202 = vsub.s32 %v2201, 127
        %v2203 = vand.u32 2147483647, %v1678
        %v2204 = vand.u32 %v2203, 8388607
        %v2205 = vor.u32 %v2204, 8388608
        %v2206 = vsub.s32 0, %v2205
        %v2207 = vadd.s32 %v2202, 1
        %vm2208 = vcmp.gt.s32.totalorder %v2207, 0
        %v2209 = vsel %vm2208, %v2207, 0
        %v2210 = vshrl.u32 %v2209, 5
        %v2211 = vand.u32 %v2209, 31
        %v2212 = vsub.s32 32, %v2211
        %v2213 = vshrl.u32 683565275, %v2212
        %v2214 = vshll.u32 683565275, %v2211
        %v2215 = vshrl.u32 2475754826, %v2212
        %v2216 = vor.u32 %v2214, %v2215
        %v2217 = vshll.u32 2475754826, %v2211
        %v2218 = vshrl.u32 2131351028, %v2212
        %v2219 = vor.u32 %v2217, %v2218
        %v2220 = vshll.u32 2131351028, %v2211
        %v2221 = vshrl.u32 2102212464, %v2212
        %v2222 = vor.u32 %v2220, %v2221
        %v2223 = vshll.u32 2102212464, %v2211
        %v2224 = vshrl.u32 920167782, %v2212
        %v2225 = vor.u32 %v2223, %v2224
        %v2226 = vshll.u32 920167782, %v2211
        %v2227 = vshrl.u32 1326507024, %v2212
        %v2228 = vor.u32 %v2226, %v2227
        %vm2229 = vcmp.lt.s32.totalorder %v2210, 1
        %vm2230 = vcmp.lt.s32.totalorder %v2210, 2
        %vm2231 = vcmp.lt.s32.totalorder %v2210, 3
        %vm2232 = vcmp.lt.s32.totalorder %v2210, 4
        %v2233 = vsel %vm2229, %v2213, %v2216
        %v2234 = vsel %vm2232, %v2222, 2102212464
        %v2235 = vsel %vm2231, %v2219, %v2234
        %v2236 = vsel %vm2230, %v2233, %v2235
        %v2237 = vsel %vm2229, %v2216, %v2219
        %v2238 = vsel %vm2232, %v2225, 920167782
        %v2239 = vsel %vm2231, %v2222, %v2238
        %v2240 = vsel %vm2230, %v2237, %v2239
        %v2241 = vsel %vm2229, %v2219, %v2222
        %v2242 = vsel %vm2232, %v2228, 1326507024
        %v2243 = vsel %vm2231, %v2225, %v2242
        %v2244 = vsel %vm2230, %v2241, %v2243
        %v2245 = vshll.u32 %v2205, 8
        %v2246 = vmul.u32.u64.compose %v2245, %v2244
        %v2247 = vextract.low.u32 %v2246
        %v2248 = vextract.high.u32 %v2246
        %v2249 = vmul.u32.u64.compose %v2245, %v2240
        %v2250 = vextract.low.u32 %v2249
        %v2251 = vextract.high.u32 %v2249
        %v2252 = vmul.u32 %v2245, %v2236
        %v2253 = vadd.s32 %v2248, %v2250
        %vm2254 = vc.u32 %v2248, %v2250
        %v2255 = vadd.s32 %v2251, 1
        %v2256 = vsel %vm2254, %v2255, %v2251
        %v2257 = vadd.s32 %v2252, %v2256
        %v2258 = vadd.s32 %v2257, 536870912
        %v2259 = vshrl.u32 %v2258, 30
        %v2260 = vshll.u32 %v2259, 30
        %v2261 = vsub.s32 %v2257, %v2260
        %vm2262 = vcmp.lt.s32.totalorder %v2261, 0
        %v2263 = vsub.s32 0, %v2261
        %v2264 = vsel %vm2262, %v2263, %v2261
        %v2265 = vclz %v2264
        %v2266 = vsub.s32 %v2265, 2
        %vm2267 = vcmp.gt.s32.totalorder 0, %v2266
        %v2268 = vsel %vm2267, 0, %v2266
        %v2269 = vsub.s32 32, %v2268
        %v2270 = vshll.u32 %v2261, %v2268
        %v2271 = vshrl.u32 %v2253, %v2269
        %v2272 = vor.u32 %v2270, %v2271
        %v2273 = vsub.s32 4294967266, %v2268
        %v2274 = vadd.s32 %v2273, 127
        %v2275 = vshll.u32 %v2274, 23
        %v2276 = vor.u32 4788187, %v2275
        %v2277 = vand.u32 2147483647, %v2276
        %v2279 = vcvt.s32.f32 %v2272
        %v2280 = vmul.f32 %v2279, %v2277
        %v2281 = vxor.u32 %v2280, 2147483648
        %v2282 = vsel %vm2199, %v2281, %v2280
        %v2283 = vsub.s32 4, %v2259
        %v2284 = vsel %vm2199, %v2283, %v2259
        %v2285 = vsel %vm2198, %v1678, %v2282
        %v2286 = vsel %vm2198, 0, %v2284
        %v2287 = vcosq.f32.pop %v2285
        %v2288 = vsinq.f32.pop %v2285
        %vm2289 = vweird.f32 %v1678
        %v2290 = vand.u32 %v2286, 3
        %vm2291 = vcmp.lt.s32.totalorder %v2290, 2
        %vm2292 = vcmp.eq.s32.totalorder %v2290, 0
        %v2293 = vxor.u32 %v2288, 2147483648
        %v2294 = vsel %vm2292, %v2287, %v2293
        %vm2295 = vcmp.eq.s32.totalorder %v2290, 2
        %v2296 = vxor.u32 %v2287, 2147483648
        %v2297 = vsel %vm2295, %v2296, %v2288
        %v2298 = vsel %vm2291, %v2294, %v2297
        %v2299 = vsel %vm2289, nan, %v2298
        %v2300 = vld [vmem:[%s9] sm:$0xff]
        %v2301 = vld [vmem:[%s9 + $0x8] sm:$0xff]
        %v2302 = vld [vmem:[%s9 + $0x10] sm:$0xff]
        %v2303 = vld [vmem:[%s9 + $0x18] sm:$0xff]
        %v2304 = vld [vmem:[%s10] sm:$0xff]
        %v2305 = vld [vmem:[%s10 + $0x8] sm:$0xff]
        %v2306 = vld [vmem:[%s10 + $0x10] sm:$0xff]
        %v2307 = vld [vmem:[%s10 + $0x18] sm:$0xff]
        %v2309 = vsel %vm1194, %v2304, 0
        %v2312 = vsel %vm1194, %v2305, 0
        %v2315 = vsel %vm1194, %v2306, 0
        %v2318 = vsel %vm1194, %v2307, 0
        %2320 = vmatprep.subr.mxu0 0.0
        %2321 = vmatpush1.msra.mxu0 0.0
        %2322 = vmatprep.subr.mxu0 0.0
        %2323 = vmatpush1.msra.mxu0 0.0
        %2324 = vmatprep.subr.mxu0 0.0
        %2325 = vmatpush1.msra.mxu0 0.0
        %2326 = vmatprep.subr.mxu0 0.0
        %2327 = vmatpush1.msra.mxu0 0.0
        %2328 = vmatprep.subr.mxu0 0.0
        %2329 = vmatpush1.msra.mxu0 0.0
        %2330 = vmatprep.subr.mxu0 0.0
        %2331 = vmatpush1.msra.mxu0 0.0
        %2332 = vmatprep.subr.mxu0 0.0
        %2333 = vmatpush1.msra.mxu0 0.0
        %2334 = vmatprep.subr.mxu0 0.0
        %2335 = vmatpush1.msra.mxu0 0.0
        %2336 = vmatprep.subr.mxu0 0.0
        %2337 = vmatpush1.msra.mxu0 0.0
        %2338 = vmatprep.subr.mxu0 0.0
        %2339 = vmatpush1.msra.mxu0 0.0
        %2340 = vmatprep.subr.mxu0 0.0
        %2341 = vmatpush1.msra.mxu0 %v2299
        %2342 = vmatprep.subr.mxu0 0.0
        %2343 = vmatpush1.msra.mxu0 %v2196
        %2344 = vmatprep.subr.mxu0 0.0
        %2345 = vmatpush1.msra.mxu0 %v2093
        %2346 = vmatprep.subr.mxu0 0.0
        %2347 = vmatpush1.msra.mxu0 %v1990
        %2348 = vmatprep.subr.mxu0 0.0
        %2349 = vmatpush1.msra.mxu0 %v1886
        %2350 = vmatprep.subr.mxu0 0.0
        %2351 = vmatpush1.msra.mxu0 %v1782
        %2352 = vmatprep.subr.mxu0 0.0
        %2353 = vmatpush2.msra.mxu0 0.0
        %2354 = vmatprep.subr.mxu0 0.0
        %2355 = vmatpush2.msra.mxu0 0.0
        %2356 = vmatprep.subr.mxu0 0.0
        %2357 = vmatpush2.msra.mxu0 0.0
        %2358 = vmatprep.subr.mxu0 0.0
        %2359 = vmatpush2.msra.mxu0 0.0
        %2360 = vmatprep.subr.mxu0 0.0
        %2361 = vmatpush2.msra.mxu0 0.0
        %2362 = vmatprep.subr.mxu0 0.0
        %2363 = vmatpush2.msra.mxu0 0.0
        %2364 = vmatprep.subr.mxu0 0.0
        %2365 = vmatpush2.msra.mxu0 0.0
        %2366 = vmatprep.subr.mxu0 0.0
        %2367 = vmatpush2.msra.mxu0 0.0
        %2368 = vmatprep.subr.mxu0 0.0
        %2369 = vmatpush2.msra.mxu0 0.0
        %2370 = vmatprep.subr.mxu0 0.0
        %2371 = vmatpush2.msra.mxu0 0.0
        %2372 = vmatprep.subr.mxu0 0.0
        %2373 = vmatpush2.msra.mxu0 0.0
        %2374 = vmatprep.subr.mxu0 0.0
        %2375 = vmatpush2.msra.mxu0 0.0
        %2376 = vmatprep.subr.mxu0 0.0
        %2377 = vmatpush2.msra.mxu0 0.0
        %2378 = vmatprep.subr.mxu0 0.0
        %2379 = vmatpush2.msra.mxu0 0.0
        %2380 = vmatprep.subr.mxu0 0.0
        %2381 = vmatpush2.msra.mxu0 0.0
        %2382 = vmatprep.subr.mxu0 0.0
        %2383 = vmatpush2.msra.mxu0 0.0
        %2384 = vmatprep.mubr.f32.mxu0 0.0
        %2385 = vmatmul.mubr.f32.gmra.mxu0 %v2309
        %v2386 = vpop.f32.mrf.mxu0
        %v2387 = vadd.f32 0.0, %v2386
        %v2388 = vpop.f32.mrf.mxu0
        %2389 = vmatprep.mubr.f32.mxu0 0.0
        %2390 = vmatmul.mubr.f32.gmra.mxu0 %v2312
        %v2391 = vpop.f32.mrf.mxu0
        %v2392 = vadd.f32 0.0, %v2391
        %v2393 = vpop.f32.mrf.mxu0
        %2394 = vmatprep.mubr.f32.mxu0 0.0
        %2395 = vmatmul.mubr.f32.gmra.mxu0 %v2315
        %v2396 = vpop.f32.mrf.mxu0
        %v2397 = vadd.f32 0.0, %v2396
        %v2398 = vpop.f32.mrf.mxu0
        %2399 = vmatprep.mubr.f32.mxu0 0.0
        %2400 = vmatmul.mubr.f32.gmra.mxu0 %v2318
        %v2401 = vpop.f32.mrf.mxu0
        %v2402 = vadd.f32 0.0, %v2401
        %v2403 = vpop.f32.mrf.mxu0
        %2404 = vdwg.mxu0
        %v2406 = vsel %vm1385, %v2300, 0
        %v2409 = vsel %vm1385, %v2301, 0
        %v2412 = vsel %vm1385, %v2302, 0
        %v2415 = vsel %vm1385, %v2303, 0
        %2417 = vmatprep.subr.mxu0 0.0
        %2418 = vmatpush1.msra.mxu0 0.0
        %2419 = vmatprep.subr.mxu0 0.0
        %2420 = vmatpush1.msra.mxu0 0.0
        %2421 = vmatprep.subr.mxu0 0.0
        %2422 = vmatpush1.msra.mxu0 0.0
        %2423 = vmatprep.subr.mxu0 0.0
        %2424 = vmatpush1.msra.mxu0 0.0
        %2425 = vmatprep.subr.mxu0 0.0
        %2426 = vmatpush1.msra.mxu0 0.0
        %2427 = vmatprep.subr.mxu0 0.0
        %2428 = vmatpush1.msra.mxu0 0.0
        %2429 = vmatprep.subr.mxu0 0.0
        %2430 = vmatpush1.msra.mxu0 0.0
        %2431 = vmatprep.subr.mxu0 0.0
        %2432 = vmatpush1.msra.mxu0 0.0
        %2433 = vmatprep.subr.mxu0 0.0
        %2434 = vmatpush1.msra.mxu0 0.0
        %2435 = vmatprep.subr.mxu0 0.0
        %2436 = vmatpush1.msra.mxu0 0.0
        %2437 = vmatprep.subr.mxu0 0.0
        %2438 = vmatpush1.msra.mxu0 0.0
        %2439 = vmatprep.subr.mxu0 0.0
        %2440 = vmatpush1.msra.mxu0 0.0
        %2441 = vmatprep.subr.mxu0 0.0
        %2442 = vmatpush1.msra.mxu0 %v1546
        %2443 = vmatprep.subr.mxu0 0.0
        %2444 = vmatpush1.msra.mxu0 %v1545
        %2445 = vmatprep.subr.mxu0 0.0
        %2446 = vmatpush1.msra.mxu0 %v1544
        %2447 = vmatprep.subr.mxu0 0.0
        %2448 = vmatpush1.msra.mxu0 %v1543
        %2449 = vmatprep.subr.mxu0 0.0
        %2450 = vmatpush2.msra.mxu0 0.0
        %2451 = vmatprep.subr.mxu0 0.0
        %2452 = vmatpush2.msra.mxu0 0.0
        %2453 = vmatprep.subr.mxu0 0.0
        %2454 = vmatpush2.msra.mxu0 0.0
        %2455 = vmatprep.subr.mxu0 0.0
        %2456 = vmatpush2.msra.mxu0 0.0
        %2457 = vmatprep.subr.mxu0 0.0
        %2458 = vmatpush2.msra.mxu0 0.0
        %2459 = vmatprep.subr.mxu0 0.0
        %2460 = vmatpush2.msra.mxu0 0.0
        %2461 = vmatprep.subr.mxu0 0.0
        %2462 = vmatpush2.msra.mxu0 0.0
        %2463 = vmatprep.subr.mxu0 0.0
        %2464 = vmatpush2.msra.mxu0 0.0
        %2465 = vmatprep.subr.mxu0 0.0
        %2466 = vmatpush2.msra.mxu0 0.0
        %2467 = vmatprep.subr.mxu0 0.0
        %2468 = vmatpush2.msra.mxu0 0.0
        %2469 = vmatprep.subr.mxu0 0.0
        %2470 = vmatpush2.msra.mxu0 0.0
        %2471 = vmatprep.subr.mxu0 0.0
        %2472 = vmatpush2.msra.mxu0 0.0
        %2473 = vmatprep.subr.mxu0 0.0
        %2474 = vmatpush2.msra.mxu0 0.0
        %2475 = vmatprep.subr.mxu0 0.0
        %2476 = vmatpush2.msra.mxu0 0.0
        %2477 = vmatprep.subr.mxu0 0.0
        %2478 = vmatpush2.msra.mxu0 0.0
        %2479 = vmatprep.subr.mxu0 0.0
        %2480 = vmatpush2.msra.mxu0 0.0
        %2481 = vmatprep.mubr.f32.mxu0 0.0
        %2482 = vmatmul.mubr.f32.gmra.mxu0 %v2406
        %v2483 = vpop.f32.mrf.mxu0
        %v2484 = vadd.f32 %v2387, %v2483
        %v2485 = vpop.f32.mrf.mxu0
        %2486 = vmatprep.mubr.f32.mxu0 0.0
        %2487 = vmatmul.mubr.f32.gmra.mxu0 %v2409
        %v2488 = vpop.f32.mrf.mxu0
        %v2489 = vadd.f32 %v2392, %v2488
        %v2490 = vpop.f32.mrf.mxu0
        %2491 = vmatprep.mubr.f32.mxu0 0.0
        %2492 = vmatmul.mubr.f32.gmra.mxu0 %v2412
        %v2493 = vpop.f32.mrf.mxu0
        %v2494 = vadd.f32 %v2397, %v2493
        %v2495 = vpop.f32.mrf.mxu0
        %2496 = vmatprep.mubr.f32.mxu0 0.0
        %2497 = vmatmul.mubr.f32.gmra.mxu0 %v2415
        %v2498 = vpop.f32.mrf.mxu0
        %v2499 = vadd.f32 %v2402, %v2498
        %v2500 = vpop.f32.mrf.mxu0
        %2501 = vdwg.mxu0
        %v2502 = vld [vmem:[%s11] sm:$0xff]
        %v2503 = vld [vmem:[%s11 + $0x8] sm:$0xff]
        %v2504 = vld [vmem:[%s11 + $0x10] sm:$0xff]
        %v2505 = vld [vmem:[%s11 + $0x18] sm:$0xff]
        %2507 = vset.pattern.permute.xlu0 0
        %2508 = vperm.xlu0 %2507, %v2502
        %v2509 = vpop.permute.xlu0 %2508
        %2512 = vset.pattern.permute.xlu0 0
        %2513 = vperm.xlu0 %2512, %v2503
        %v2514 = vpop.permute.xlu0 %2513
        %2517 = vset.pattern.permute.xlu0 0
        %2518 = vperm.xlu0 %2517, %v2504
        %v2519 = vpop.permute.xlu0 %2518
        %2522 = vset.pattern.permute.xlu0 0
        %2523 = vperm.xlu0 %2522, %v2505
        %v2524 = vpop.permute.xlu0 %2523
        %v2526 = vadd.f32 %v2484, %v2509
        %v2527 = vadd.f32 %v2489, %v2514
        %v2528 = vadd.f32 %v2494, %v2519
        %v2529 = vadd.f32 %v2499, %v2524
        %v2530 = vmul.f32 %v2526, 10.0
        %v2531 = vmul.f32 %v2527, 10.0
        %v2532 = vmul.f32 %v2528, 10.0
        %v2533 = vmul.f32 %v2529, 10.0
        %vm2534 = vcmp.gt.f32.partialorder %v2530, 20.0
        %vm2535 = vcmp.gt.f32.partialorder %v2531, 20.0
        %vm2536 = vcmp.gt.f32.partialorder %v2532, 20.0
        %vm2537 = vcmp.gt.f32.partialorder %v2533, 20.0
        %v2538 = vmin.f32 %v2530, 20.0
        %v2539 = vmin.f32 %v2531, 20.0
        %v2540 = vmin.f32 %v2532, 20.0
        %v2541 = vmin.f32 %v2533, 20.0
        %v2542 = vmul.f32 %v2538, 1.442695
        %v2543 = vpow.pop %v2542
        %v2544 = vmul.f32 %v2539, 1.442695
        %v2545 = vpow.pop %v2544
        %v2546 = vmul.f32 %v2540, 1.442695
        %v2547 = vpow.pop %v2546
        %v2548 = vmul.f32 %v2541, 1.442695
        %v2549 = vpow.pop %v2548
        %v2550 = vadd.f32 %v2543, 1.0
        %v2551 = vlog2.pop %v2550
        %v2552 = vmul.f32 %v2551, 0.6931472
        %v2553 = vmul.f32 -0.5, %v2543
        %v2554 = vadd.f32 %v2553, 1.0
        %v2555 = vmul.f32 %v2554, %v2543
        %v2556 = vand.u32 2147483647, %v2543
        %vm2557 = vcmp.lt.f32.partialorder %v2556, 0.0004427343
        %v2558 = vsel %vm2557, %v2555, %v2552
        %v2559 = vadd.f32 %v2545, 1.0
        %v2560 = vlog2.pop %v2559
        %v2561 = vmul.f32 %v2560, 0.6931472
        %v2562 = vmul.f32 -0.5, %v2545
        %v2563 = vadd.f32 %v2562, 1.0
        %v2564 = vmul.f32 %v2563, %v2545
        %v2565 = vand.u32 2147483647, %v2545
        %vm2566 = vcmp.lt.f32.partialorder %v2565, 0.0004427343
        %v2567 = vsel %vm2566, %v2564, %v2561
        %v2568 = vadd.f32 %v2547, 1.0
        %v2569 = vlog2.pop %v2568
        %v2570 = vmul.f32 %v2569, 0.6931472
        %v2571 = vmul.f32 -0.5, %v2547
        %v2572 = vadd.f32 %v2571, 1.0
        %v2573 = vmul.f32 %v2572, %v2547
        %v2574 = vand.u32 2147483647, %v2547
        %vm2575 = vcmp.lt.f32.partialorder %v2574, 0.0004427343
        %v2576 = vsel %vm2575, %v2573, %v2570
        %v2577 = vadd.f32 %v2549, 1.0
        %v2578 = vlog2.pop %v2577
        %v2579 = vmul.f32 %v2578, 0.6931472
        %v2580 = vmul.f32 -0.5, %v2549
        %v2581 = vadd.f32 %v2580, 1.0
        %v2582 = vmul.f32 %v2581, %v2549
        %v2583 = vand.u32 2147483647, %v2549
        %vm2584 = vcmp.lt.f32.partialorder %v2583, 0.0004427343
        %v2585 = vsel %vm2584, %v2582, %v2579
        %v2586 = vmul.f32 %v2558, %v1348
        %v2587 = vmul.f32 %v2567, %v1348
        %v2588 = vmul.f32 %v2576, %v1348
        %v2589 = vmul.f32 %v2585, %v1348
        %v2590 = vsel %vm2534, %v2526, %v2586
        %v2591 = vsel %vm2535, %v2527, %v2587
        %v2592 = vsel %vm2536, %v2528, %v2588
        %v2593 = vsel %vm2537, %v2529, %v2589
        %v2594 = vld [vmem:[%s12] sm:$0x7]
        %v2595 = vld [vmem:[%s13] sm:$0x7]
        %2597 = vset.pattern.permute.xlu0 0
        %2598 = vperm.xlu0 %2597, %v2595
        %v2599 = vpop.permute.xlu0 %2598
        %v2602 = vsel %vm1385, %v2594, 0
        %2604 = vmatprep.subr.mxu0 0.0
        %2605 = vmatpush1.msra.mxu0 0.0
        %2606 = vmatprep.subr.mxu0 0.0
        %2607 = vmatpush1.msra.mxu0 0.0
        %2608 = vmatprep.subr.mxu0 0.0
        %2609 = vmatpush1.msra.mxu0 0.0
        %2610 = vmatprep.subr.mxu0 0.0
        %2611 = vmatpush1.msra.mxu0 0.0
        %2612 = vmatprep.subr.mxu0 0.0
        %2613 = vmatpush1.msra.mxu0 0.0
        %2614 = vmatprep.subr.mxu0 0.0
        %2615 = vmatpush1.msra.mxu0 0.0
        %2616 = vmatprep.subr.mxu0 0.0
        %2617 = vmatpush1.msra.mxu0 0.0
        %2618 = vmatprep.subr.mxu0 0.0
        %2619 = vmatpush1.msra.mxu0 0.0
        %2620 = vmatprep.subr.mxu0 0.0
        %2621 = vmatpush1.msra.mxu0 0.0
        %2622 = vmatprep.subr.mxu0 0.0
        %2623 = vmatpush1.msra.mxu0 0.0
        %2624 = vmatprep.subr.mxu0 0.0
        %2625 = vmatpush1.msra.mxu0 0.0
        %2626 = vmatprep.subr.mxu0 0.0
        %2627 = vmatpush1.msra.mxu0 0.0
        %2628 = vmatprep.subr.mxu0 0.0
        %2629 = vmatpush1.msra.mxu0 %v2593
        %2630 = vmatprep.subr.mxu0 0.0
        %2631 = vmatpush1.msra.mxu0 %v2592
        %2632 = vmatprep.subr.mxu0 0.0
        %2633 = vmatpush1.msra.mxu0 %v2591
        %2634 = vmatprep.subr.mxu0 0.0
        %2635 = vmatpush1.msra.mxu0 %v2590
        %2636 = vmatprep.subr.mxu0 0.0
        %2637 = vmatpush2.msra.mxu0 0.0
        %2638 = vmatprep.subr.mxu0 0.0
        %2639 = vmatpush2.msra.mxu0 0.0
        %2640 = vmatprep.subr.mxu0 0.0
        %2641 = vmatpush2.msra.mxu0 0.0
        %2642 = vmatprep.subr.mxu0 0.0
        %2643 = vmatpush2.msra.mxu0 0.0
        %2644 = vmatprep.subr.mxu0 0.0
        %2645 = vmatpush2.msra.mxu0 0.0
        %2646 = vmatprep.subr.mxu0 0.0
        %2647 = vmatpush2.msra.mxu0 0.0
        %2648 = vmatprep.subr.mxu0 0.0
        %2649 = vmatpush2.msra.mxu0 0.0
        %2650 = vmatprep.subr.mxu0 0.0
        %2651 = vmatpush2.msra.mxu0 0.0
        %2652 = vmatprep.subr.mxu0 0.0
        %2653 = vmatpush2.msra.mxu0 0.0
        %2654 = vmatprep.subr.mxu0 0.0
        %2655 = vmatpush2.msra.mxu0 0.0
        %2656 = vmatprep.subr.mxu0 0.0
        %2657 = vmatpush2.msra.mxu0 0.0
        %2658 = vmatprep.subr.mxu0 0.0
        %2659 = vmatpush2.msra.mxu0 0.0
        %2660 = vmatprep.subr.mxu0 0.0
        %2661 = vmatpush2.msra.mxu0 0.0
        %2662 = vmatprep.subr.mxu0 0.0
        %2663 = vmatpush2.msra.mxu0 0.0
        %2664 = vmatprep.subr.mxu0 0.0
        %2665 = vmatpush2.msra.mxu0 0.0
        %2666 = vmatprep.subr.mxu0 0.0
        %2667 = vmatpush2.msra.mxu0 0.0
        %2668 = vmatprep.mubr.f32.mxu0 0.0
        %2669 = vmatmul.mubr.f32.gmra.mxu0 %v2602
        %v2670 = vpop.f32.mrf.mxu0
        %v2671 = vadd.f32 %v2599, %v2670
        %v2672 = vpop.f32.mrf.mxu0
        %2673 = vdwg.mxu0
        %v2674 = vxor.u32 %v2671, 2147483648
        %v2675 = vmul.f32 %v2674, 1.442695
        %v2676 = vpow.pop %v2675
        %v2677 = vadd.f32 %v2676, 1.0
        %v2678 = vrcp.pop %v2677
        %v2679 = vmul.f32 1.0, %v2678
        %2680 = vst [vmem:[%s521 + $0x1] sm:$0x7] %v2679
        %s2681 = sand.u32 %s348, 1
        %s2682 = scalar_lea.sflag [#allocation5], %s2681
        %s2683 = sand.u32 %s348, 1
        %s2684 = smul.addr %s2683, 4
        %s2685 = scalar_lea.vmem [#allocation8], %s2684
        // Predicated region
        $region85: #{tpu_custom_call.1} parent=75 // pred_check
          %p2686 = pneg %p358
        $region86: #{tpu_custom_call.1} parent=75 // pred_check_branch
          %2688 = sbr.rel (%p2686) target = $region88
        $region87: #{tpu_custom_call.1} parent=75 // pred_region
          %s2690 = ssub.s32 64, 64
          %2691 = vsyncadd %s2682, %s2690
          %s2692 = smul.addr %s36, 64
          %s2693 = scalar_lea.hbm %s14, %s2692
          %s2695 = sshll.u32 %s2685, 4
          %s2696 = int_to_ptr.vmem [resolvable:$true] %s2695
          %2698 = dma.vmem_to_hbm [thread:$0]  %s2696, 64, %s2693, %s2682
        $region88: #{tpu_custom_call.1} parent=75 // pred_fallthru
          _
      $region76: #{tpu_custom_call.1} parent=5 // pred_fallthru
        _
      %p2699 = scmp.le.s32.totalorder 2, %s31
      // Predicated region
      $region89: #{tpu_custom_call.1} parent=5 // pred_check
        %p2700 = pneg %p2699
      $region90: #{tpu_custom_call.1} parent=5 // pred_check_branch
        %2702 = sbr.rel (%p2700) target = $region92
      $region91: #{tpu_custom_call.1} parent=5 // pred_region
        %s2703 = ssub.s32 %s31, 2
        // Predicated region
        $region93: #{tpu_custom_call.1} parent=91 // pred_check
          %p2704 = pneg %p364
        $region94: #{tpu_custom_call.1} parent=91 // pred_check_branch
          %2706 = sbr.rel (%p2704) target = $region96
        $region95: #{tpu_custom_call.1} parent=91 // pred_region
          %s2707 = sand.u32 %s349, 1
          %s2708 = scalar_lea.sflag [#allocation5], %s2707
          %s2709 = sand.u32 %s349, 1
          %s2710 = smul.addr %s2709, 4
          %s2711 = scalar_lea.vmem [#allocation8], %s2710
          %2712 = dma.done %s2708, 64
        $region96: #{tpu_custom_call.1} parent=91 // pred_fallthru
          _
      $region92: #{tpu_custom_call.1} parent=5 // pred_fallthru
        _
    $region6: #{tpu_custom_call.1} parent=1 // loop_footer
      %s35 = sadd.s32 1, %s31
    $region7: #{tpu_custom_call.1} parent=1 // loop_footer_branch
      %30 = sbr.rel target = $region3
    $region8: #{tpu_custom_call.1} parent=1 // loop_exit
      _
    %2713 = vsyncpa [#allocation4], 1
    %s2714 = scalar_lea.sflag [#allocation4], 1
    %2715 = vsyncpa %s2714, 1
    %2716 = vsyncpa [#allocation7], 1
    %s2717 = scalar_lea.sflag [#allocation7], 1
    %2718 = vsyncpa %s2717, 1
    %2719 = vsyncpa [#allocation5], 1
    %s2720 = scalar_lea.sflag [#allocation5], 1
    %2721 = vsyncpa %s2720, 1

</llo_original>
